<compile_context>
chip_gen: v6e
topology: v6e:2x2x1
jax: 0.10.0
libtpu: 0.0.40
codegen_flags: <defaults>
</compile_context>

<pallas_src>
import functools

import jax
import jax.numpy as jnp
from jax import lax
from jax.experimental import pallas as pl
from jax.experimental.pallas import tpu as pltpu


# ---------------- hyper-parameters (small, synthetic) ----------------
BATCH = 2
AUDIO_CODEC_SIZE = 32      # hp.Audio_Codec_Size  (LSTM input size)
HIDDEN = 32                # hp.Diffusion.Token_Predictor.Size
LSTM_STACK = 2             # hp.Diffusion.Token_Predictor.LSTM.Stack (fused as 2 below)
TOKENS = 15                # hp.Tokens -> projection out_channels = TOKENS + 1
N_CLASSES = TOKENS + 1
TIME = 8

C_PAD = 128                # class dim padded to one lane-width for the output slab
NEG_BIG = -1.0e9           # pad-logit bias: exp(NEG_BIG - m) == 0 in f32


def _align8(n):
    return (n + 7) // 8 * 8


# ---------------- Pallas kernel ----------------
def token_predictor_kernel(x_ref, slab_ref, pred_ref, *, time, batch, d_in, hidden):
    """2-layer LSTM (wavefront-fused) + 1x1-conv projection + log_softmax.

    x_ref:    [T*B, D]    time-major flattened input (row t*B + b)
    slab_ref: [R, 8H]     packed f32 weights (layout mirrors pack_weight_slab)
    pred_ref: [T*B, 128]  log-probabilities, classes in lanes [0, C)
    """
    T, B, D, H = time, batch, d_in, hidden
    H4 = 4 * H

    # Static, 8-aligned row offsets inside the packed weight slab.
    off_fuse = _align8(D)
    off_bias = _align8(off_fuse + 2 * H)
    off_wproj = _align8(off_bias + 1)
    off_bproj = _align8(off_wproj + H)

    wih0 = slab_ref[0:D, 0:H4]                                          # [D, 4H]
    # Fused recurrent block [[whh0, wih1], [0, whh1]], cast to bf16 ONCE so the
    # per-step MXU matmul is single-pass (accumulation stays f32).
    wfuse = slab_ref[off_fuse:off_fuse + 2 * H, :].astype(jnp.bfloat16)  # [2H, 8H]
    b0 = slab_ref[off_bias:off_bias + 1, 0:H4]                          # [1, 4H]
    b1 = slab_ref[off_bias:off_bias + 1, H4:2 * H4]                     # [1, 4H]
    wproj = slab_ref[off_wproj:off_wproj + H, 0:C_PAD]                  # [H, 128]
    bproj = slab_ref[off_bproj:off_bproj + 1, 0:C_PAD]                  # [1, 128]

    # Layer-0 input projection hoisted out of the recurrence:
    # one [T*B, D] @ [D, 4H] matmul (+ bias) instead of T tiny per-step ones.
    zin0 = jnp.dot(x_ref[...], wih0, preferred_element_type=jnp.float32) + b0

    def lstm_cell(z, c):
        # One sigmoid + one tanh over the full 4H slab, then gate slices
        # (torch gate order: i, f, g, o).
        sz = jax.nn.sigmoid(z)
        tz = jnp.tanh(z)
        i_g = sz[:, 0 * H:1 * H]
        f_g = sz[:, 1 * H:2 * H]
        g_g = tz[:, 2 * H:3 * H]
        o_g = sz[:, 3 * H:4 * H]
        c_new = f_g * c + i_g * g_g
        h_new = o_g * jnp.tanh(c_new)
        return h_new, c_new

    zeros = jnp.zeros((B, H), jnp.float32)
    h0, c0 = zeros, zeros          # layer-0 state (time s-1 at top of super-step s)
    h1, c1 = zeros, zeros          # layer-1 state (time s-2 at top of super-step s)
    h1_seq = []                    # layer-1 hidden sequence, kept in vregs

    # Super-step 0: layer-0 @ t=0 only (all recurrent contributions are zero).
    h0, c0 = lstm_cell(zin0[0:B, :], c0)

    # Super-steps 1..T-1 (statically unrolled): layer-0 @ t=s and layer-1 @ t=s-1
    # share a single [B, 2H] @ [2H, 8H] bf16 matmul.
    for s in range(1, T):
        lhs = jnp.concatenate([h0, h1], axis=1).astype(jnp.bfloat16)     # [B, 2H]
        zz = jnp.dot(lhs, wfuse, preferred_element_type=jnp.float32)     # [B, 8H]
        z0 = zz[:, 0:H4] + zin0[s * B:(s + 1) * B, :]                    # layer-0 @ t=s
        z1 = zz[:, H4:2 * H4] + b1                                       # layer-1 @ t=s-1
        h1, c1 = lstm_cell(z1, c1)
        h1_seq.append(h1)
        h0, c0 = lstm_cell(z0, c0)

    # Final super-step: layer-1 @ t=T-1 only (first half of zz is unused).
    lhs = jnp.concatenate([h0, h1], axis=1).astype(jnp.bfloat16)
    zz = jnp.dot(lhs, wfuse, preferred_element_type=jnp.float32)
    h1, c1 = lstm_cell(zz[:, H4:2 * H4] + b1, c1)
    h1_seq.append(h1)

    # 1x1 Conv1d == per-timestep linear projection, then log_softmax over the
    # (lane-padded) class dim.  Padded classes carry a -1e9 bias so they do not
    # perturb the normalization; the full [T*B, 128] store is unmasked.
    hidden_seq = jnp.concatenate(h1_seq, axis=0)                          # [T*B, H]
    logits = jnp.dot(hidden_seq, wproj, preferred_element_type=jnp.float32) + bproj
    m = jnp.max(logits, axis=-1, keepdims=True)
    lse = jnp.log(jnp.sum(jnp.exp(logits - m), axis=-1, keepdims=True)) + m
    pred_ref[...] = logits - lse


# ---------------- weight packing (wrapper / XLA side) ----------------
def pack_weight_slab(params):
    """Pack all weights into one lane-dense f32 slab (single startup DMA)."""
    D, H, C = AUDIO_CODEC_SIZE, HIDDEN, N_CLASSES
    H4 = 4 * H
    off_fuse = _align8(D)
    off_bias = _align8(off_fuse + 2 * H)
    off_wproj = _align8(off_bias + 1)
    off_bproj = _align8(off_wproj + H)
    rows = _align8(off_bproj + 1)

    # Fused recurrent block matrix: [[whh0, wih1], [0, whh1]]  -> [2H, 8H].
    top = jnp.concatenate([params["whh0"], params["wih1"]], axis=1)
    bot = jnp.concatenate([jnp.zeros((H, H4), jnp.float32), params["whh1"]], axis=1)
    wfuse = jnp.concatenate([top, bot], axis=0)

    slab = jnp.zeros((rows, 2 * H4), jnp.float32)
    slab = slab.at[0:D, 0:H4].set(params["wih0"])
    slab = slab.at[off_fuse:off_fuse + 2 * H, :].set(wfuse)
    slab = slab.at[off_bias, 0:H4].set(params["b0"][0])
    slab = slab.at[off_bias, H4:2 * H4].set(params["b1"][0])
    slab = slab.at[off_wproj:off_wproj + H, 0:C].set(params["wproj"])
    slab = slab.at[off_bproj, 0:C].set(params["bproj"][0])
    slab = slab.at[off_bproj, C:C_PAD].set(NEG_BIG)   # pad-class logits -> -inf-ish
    return slab


# ---------------- wrapper ----------------
def token_predictor(encodings, params):
    """encodings: [Batch, Audio_Codec_Size, Time] -> log-probs [Batch, Classes, Time]."""
    B, D, T = encodings.shape
    H = HIDDEN
    C = N_CLASSES

    # [B, D, T] -> [T, B, D] -> flat time-major [T*B, D]
    x = jnp.transpose(encodings, (2, 0, 1)).reshape(T * B, D).astype(jnp.float32)
    slab = pack_weight_slab(params)

    kernel = functools.partial(
        token_predictor_kernel, time=T, batch=B, d_in=D, hidden=H)

    pred_flat = pl.pallas_call(
        kernel,
        out_shape=jax.ShapeDtypeStruct((T * B, C_PAD), jnp.float32),
        in_specs=[pl.BlockSpec(memory_space=pltpu.MemorySpace.VMEM)] * 2,
        out_specs=pl.BlockSpec(memory_space=pltpu.MemorySpace.VMEM),
    )(x, slab)

    # [T*B, 128] -> [T*B, C] -> [T, B, C] -> [B, C, T]
    return jnp.transpose(pred_flat[:, :C].reshape(T, B, C), (1, 2, 0))


# ---------------- deterministic parameter init ----------------
def init_params(key):
    ks = jax.random.split(key, 9)
    s_lstm = 1.0 / jnp.sqrt(HIDDEN)
    s_proj = 1.0 / jnp.sqrt(HIDDEN)  # xavier-ish ('linear' gain) for the 1x1 conv

    def u(k, shape, scale):
        return jax.random.uniform(k, shape, jnp.float32, -scale, scale)

    params = {
        # stored transposed vs torch: [in, 4H] so the kernel does x @ W
        "wih0": u(ks[0], (AUDIO_CODEC_SIZE, 4 * HIDDEN), s_lstm),
        "whh0": u(ks[1], (HIDDEN, 4 * HIDDEN), s_lstm),
        "b0":   u(ks[2], (1, 4 * HIDDEN), s_lstm),          # b_ih + b_hh combined
        "wih1": u(ks[3], (HIDDEN, 4 * HIDDEN), s_lstm),
        "whh1": u(ks[4], (HIDDEN, 4 * HIDDEN), s_lstm),
        "b1":   u(ks[5], (1, 4 * HIDDEN), s_lstm),
        # torch Conv1d weight [C, H, 1] -> stored as [H, C]
        "wproj": u(ks[6], (HIDDEN, N_CLASSES), s_proj),
        "bproj": u(ks[7], (1, N_CLASSES), s_proj),
    }
    return params


# ---------------- pure-JAX f32 reference (for correctness check) ----------------
def reference(encodings, p):
    x = jnp.transpose(encodings, (2, 0, 1)).astype(jnp.float32)  # [T, B, D]
    T, B, _ = x.shape
    H = HIDDEN

    def run_layer(seq, wih, whh, b):
        def step(carry, x_t):
            h, c = carry
            z = x_t @ wih + h @ whh + b
            i = jax.nn.sigmoid(z[:, 0 * H:1 * H])
            f = jax.nn.sigmoid(z[:, 1 * H:2 * H])
            g = jnp.tanh(z[:, 2 * H:3 * H])
            o = jax.nn.sigmoid(z[:, 3 * H:4 * H])
            c = f * c + i * g
            h = o * jnp.tanh(c)
            return (h, c), h
        init = (jnp.zeros((B, H)), jnp.zeros((B, H)))
        _, out = lax.scan(step, init, seq)
        return out

    h1 = run_layer(x, p["wih0"], p["whh0"], p["b0"])
    h2 = run_layer(h1, p["wih1"], p["whh1"], p["b1"])
    logits = h2 @ p["wproj"] + p["bproj"]                     # [T, B, C]
    logp = jax.nn.log_softmax(logits, axis=-1)
    return jnp.transpose(logp, (1, 2, 0))                     # [B, C, T]


# ---------------- main ----------------
if __name__ == "__main__":
    key = jax.random.PRNGKey(0)
    k_x, k_p = jax.random.split(key)
    encodings = jax.random.normal(
        k_x, (BATCH, AUDIO_CODEC_SIZE, TIME), dtype=jnp.float32)
    params = init_params(k_p)

    out = token_predictor(encodings, params)
    out = jax.block_until_ready(out)

    ref = reference(encodings, params)
    assert out.shape == (BATCH, N_CLASSES, TIME), out.shape
    # Tolerance loosened vs. the pure-f32 reference because the recurrent
    # matmul uses bf16 operands (f32 accumulation); observed error is ~1e-3,
    # while any semantic bug (gate order, wavefront skew) would be >0.1.
    assert jnp.allclose(out, ref, atol=3e-2, rtol=3e-2), \
        float(jnp.max(jnp.abs(out - ref)))

    print("KERNEL_OK")
</pallas_src>

<mosaic_0001>
module attributes {stable_mosaic.version = 11 : i64} {
  func.func @token_predictor_kernel(%arg0: memref<16x32xf32, #tpu.memory_space<vmem>>, %arg1: memref<144x256xf32, #tpu.memory_space<vmem>>, %arg2: memref<16x128xf32, #tpu.memory_space<vmem>>) attributes {dimension_semantics = [], scalar_prefetch = 0 : i64, scratch_operands = 0 : i64, tpu.core_type = #tpu.core_type<tc>} {
    %c0 = arith.constant 0 : index
    %c0_0 = arith.constant 0 : index
    %0 = vector.load %arg1[%c0, %c0_0] : memref<144x256xf32, #tpu.memory_space<vmem>>, vector<32x128xf32>
    %c32 = arith.constant 32 : index
    %c0_1 = arith.constant 0 : index
    %1 = vector.load %arg1[%c32, %c0_1] : memref<144x256xf32, #tpu.memory_space<vmem>>, vector<64x256xf32>
    %2 = arith.truncf %1 : vector<64x256xf32> to vector<64x256xbf16>
    %c96 = arith.constant 96 : index
    %c0_2 = arith.constant 0 : index
    %3 = vector.load %arg1[%c96, %c0_2] : memref<144x256xf32, #tpu.memory_space<vmem>>, vector<1x128xf32>
    %c96_3 = arith.constant 96 : index
    %c128 = arith.constant 128 : index
    %4 = vector.load %arg1[%c96_3, %c128] : memref<144x256xf32, #tpu.memory_space<vmem>>, vector<1x128xf32>
    %c104 = arith.constant 104 : index
    %c0_4 = arith.constant 0 : index
    %5 = vector.load %arg1[%c104, %c0_4] : memref<144x256xf32, #tpu.memory_space<vmem>>, vector<32x128xf32>
    %c136 = arith.constant 136 : index
    %c0_5 = arith.constant 0 : index
    %6 = vector.load %arg1[%c136, %c0_5] : memref<144x256xf32, #tpu.memory_space<vmem>>, vector<1x128xf32>
    %c0_6 = arith.constant 0 : index
    %c0_7 = arith.constant 0 : index
    %7 = vector.load %arg0[%c0_6, %c0_7] : memref<16x32xf32, #tpu.memory_space<vmem>>, vector<16x32xf32>
    %cst = arith.constant dense<0.000000e+00> : vector<16x128xf32>
    %8 = tpu.matmul %7, %0, %cst {dimension_numbers = #tpu.dot_dimension_numbers<[1], [0], [0], [1], [0, 0, 1, 1], [], []>} : vector<16x32xf32>, vector<32x128xf32>, vector<16x128xf32> -> vector<16x128xf32>
    %9 = vector.broadcast %3 : vector<1x128xf32> to vector<16x128xf32>
    %10 = arith.addf %8, %9 : vector<16x128xf32>
    %cst_8 = arith.constant 0.000000e+00 : f32
    %11 = vector.broadcast %cst_8 : f32 to vector<2x32xf32>
    %12 = vector.extract_strided_slice %10 {offsets = [0, 0], sizes = [2, 128], strides = [1, 1]} : vector<16x128xf32> to vector<2x128xf32>
    %13 = arith.negf %12 : vector<2x128xf32>
    %14 = math.exp %13 : vector<2x128xf32>
    %cst_9 = arith.constant 1.000000e+00 : f32
    %15 = vector.broadcast %cst_9 : f32 to vector<2x128xf32>
    %16 = arith.addf %15, %14 : vector<2x128xf32>
    %17 = arith.divf %15, %16 : vector<2x128xf32>
    %18 = math.tanh %12 : vector<2x128xf32>
    %19 = vector.extract_strided_slice %17 {offsets = [0, 0], sizes = [2, 32], strides = [1, 1]} : vector<2x128xf32> to vector<2x32xf32>
    %20 = vector.extract_strided_slice %17 {offsets = [0, 32], sizes = [2, 32], strides = [1, 1]} : vector<2x128xf32> to vector<2x32xf32>
    %21 = vector.extract_strided_slice %18 {offsets = [0, 64], sizes = [2, 32], strides = [1, 1]} : vector<2x128xf32> to vector<2x32xf32>
    %22 = vector.extract_strided_slice %17 {offsets = [0, 96], sizes = [2, 32], strides = [1, 1]} : vector<2x128xf32> to vector<2x32xf32>
    %23 = arith.mulf %20, %11 : vector<2x32xf32>
    %24 = arith.mulf %19, %21 : vector<2x32xf32>
    %25 = arith.addf %23, %24 : vector<2x32xf32>
    %26 = math.tanh %25 : vector<2x32xf32>
    %27 = arith.mulf %22, %26 : vector<2x32xf32>
    %28 = tpu.concatenate %27, %11 in 1 : vector<2x32xf32>, vector<2x32xf32> -> vector<2x64xf32>
    %29 = arith.truncf %28 : vector<2x64xf32> to vector<2x64xbf16>
    %cst_10 = arith.constant dense<0.000000e+00> : vector<2x256xf32>
    %30 = tpu.matmul %29, %2, %cst_10 {dimension_numbers = #tpu.dot_dimension_numbers<[1], [0], [0], [1], [0, 0, 1, 1], [], []>} : vector<2x64xbf16>, vector<64x256xbf16>, vector<2x256xf32> -> vector<2x256xf32>
    %31 = vector.extract_strided_slice %30 {offsets = [0, 0], sizes = [2, 128], strides = [1, 1]} : vector<2x256xf32> to vector<2x128xf32>
    %32 = vector.extract_strided_slice %10 {offsets = [2, 0], sizes = [2, 128], strides = [1, 1]} : vector<16x128xf32> to vector<2x128xf32>
    %33 = arith.addf %31, %32 : vector<2x128xf32>
    %34 = vector.extract_strided_slice %30 {offsets = [0, 128], sizes = [2, 128], strides = [1, 1]} : vector<2x256xf32> to vector<2x128xf32>
    %35 = vector.broadcast %4 : vector<1x128xf32> to vector<2x128xf32>
    %36 = arith.addf %34, %35 : vector<2x128xf32>
    %37 = arith.negf %36 : vector<2x128xf32>
    %38 = math.exp %37 : vector<2x128xf32>
    %cst_11 = arith.constant 1.000000e+00 : f32
    %39 = vector.broadcast %cst_11 : f32 to vector<2x128xf32>
    %40 = arith.addf %39, %38 : vector<2x128xf32>
    %41 = arith.divf %39, %40 : vector<2x128xf32>
    %42 = math.tanh %36 : vector<2x128xf32>
    %43 = vector.extract_strided_slice %41 {offsets = [0, 0], sizes = [2, 32], strides = [1, 1]} : vector<2x128xf32> to vector<2x32xf32>
    %44 = vector.extract_strided_slice %41 {offsets = [0, 32], sizes = [2, 32], strides = [1, 1]} : vector<2x128xf32> to vector<2x32xf32>
    %45 = vector.extract_strided_slice %42 {offsets = [0, 64], sizes = [2, 32], strides = [1, 1]} : vector<2x128xf32> to vector<2x32xf32>
    %46 = vector.extract_strided_slice %41 {offsets = [0, 96], sizes = [2, 32], strides = [1, 1]} : vector<2x128xf32> to vector<2x32xf32>
    %47 = arith.mulf %44, %11 : vector<2x32xf32>
    %48 = arith.mulf %43, %45 : vector<2x32xf32>
    %49 = arith.addf %47, %48 : vector<2x32xf32>
    %50 = math.tanh %49 : vector<2x32xf32>
    %51 = arith.mulf %46, %50 : vector<2x32xf32>
    %52 = arith.negf %33 : vector<2x128xf32>
    %53 = math.exp %52 : vector<2x128xf32>
    %cst_12 = arith.constant 1.000000e+00 : f32
    %54 = vector.broadcast %cst_12 : f32 to vector<2x128xf32>
    %55 = arith.addf %54, %53 : vector<2x128xf32>
    %56 = arith.divf %54, %55 : vector<2x128xf32>
    %57 = math.tanh %33 : vector<2x128xf32>
    %58 = vector.extract_strided_slice %56 {offsets = [0, 0], sizes = [2, 32], strides = [1, 1]} : vector<2x128xf32> to vector<2x32xf32>
    %59 = vector.extract_strided_slice %56 {offsets = [0, 32], sizes = [2, 32], strides = [1, 1]} : vector<2x128xf32> to vector<2x32xf32>
    %60 = vector.extract_strided_slice %57 {offsets = [0, 64], sizes = [2, 32], strides = [1, 1]} : vector<2x128xf32> to vector<2x32xf32>
    %61 = vector.extract_strided_slice %56 {offsets = [0, 96], sizes = [2, 32], strides = [1, 1]} : vector<2x128xf32> to vector<2x32xf32>
    %62 = arith.mulf %59, %25 : vector<2x32xf32>
    %63 = arith.mulf %58, %60 : vector<2x32xf32>
    %64 = arith.addf %62, %63 : vector<2x32xf32>
    %65 = math.tanh %64 : vector<2x32xf32>
    %66 = arith.mulf %61, %65 : vector<2x32xf32>
    %67 = tpu.concatenate %66, %51 in 1 : vector<2x32xf32>, vector<2x32xf32> -> vector<2x64xf32>
    %68 = arith.truncf %67 : vector<2x64xf32> to vector<2x64xbf16>
    %cst_13 = arith.constant dense<0.000000e+00> : vector<2x256xf32>
    %69 = tpu.matmul %68, %2, %cst_13 {dimension_numbers = #tpu.dot_dimension_numbers<[1], [0], [0], [1], [0, 0, 1, 1], [], []>} : vector<2x64xbf16>, vector<64x256xbf16>, vector<2x256xf32> -> vector<2x256xf32>
    %70 = vector.extract_strided_slice %69 {offsets = [0, 0], sizes = [2, 128], strides = [1, 1]} : vector<2x256xf32> to vector<2x128xf32>
    %71 = vector.extract_strided_slice %10 {offsets = [4, 0], sizes = [2, 128], strides = [1, 1]} : vector<16x128xf32> to vector<2x128xf32>
    %72 = arith.addf %70, %71 : vector<2x128xf32>
    %73 = vector.extract_strided_slice %69 {offsets = [0, 128], sizes = [2, 128], strides = [1, 1]} : vector<2x256xf32> to vector<2x128xf32>
    %74 = vector.broadcast %4 : vector<1x128xf32> to vector<2x128xf32>
    %75 = arith.addf %73, %74 : vector<2x128xf32>
    %76 = arith.negf %75 : vector<2x128xf32>
    %77 = math.exp %76 : vector<2x128xf32>
    %cst_14 = arith.constant 1.000000e+00 : f32
    %78 = vector.broadcast %cst_14 : f32 to vector<2x128xf32>
    %79 = arith.addf %78, %77 : vector<2x128xf32>
    %80 = arith.divf %78, %79 : vector<2x128xf32>
    %81 = math.tanh %75 : vector<2x128xf32>
    %82 = vector.extract_strided_slice %80 {offsets = [0, 0], sizes = [2, 32], strides = [1, 1]} : vector<2x128xf32> to vector<2x32xf32>
    %83 = vector.extract_strided_slice %80 {offsets = [0, 32], sizes = [2, 32], strides = [1, 1]} : vector<2x128xf32> to vector<2x32xf32>
    %84 = vector.extract_strided_slice %81 {offsets = [0, 64], sizes = [2, 32], strides = [1, 1]} : vector<2x128xf32> to vector<2x32xf32>
    %85 = vector.extract_strided_slice %80 {offsets = [0, 96], sizes = [2, 32], strides = [1, 1]} : vector<2x128xf32> to vector<2x32xf32>
    %86 = arith.mulf %83, %49 : vector<2x32xf32>
    %87 = arith.mulf %82, %84 : vector<2x32xf32>
    %88 = arith.addf %86, %87 : vector<2x32xf32>
    %89 = math.tanh %88 : vector<2x32xf32>
    %90 = arith.mulf %85, %89 : vector<2x32xf32>
    %91 = arith.negf %72 : vector<2x128xf32>
    %92 = math.exp %91 : vector<2x128xf32>
    %cst_15 = arith.constant 1.000000e+00 : f32
    %93 = vector.broadcast %cst_15 : f32 to vector<2x128xf32>
    %94 = arith.addf %93, %92 : vector<2x128xf32>
    %95 = arith.divf %93, %94 : vector<2x128xf32>
    %96 = math.tanh %72 : vector<2x128xf32>
    %97 = vector.extract_strided_slice %95 {offsets = [0, 0], sizes = [2, 32], strides = [1, 1]} : vector<2x128xf32> to vector<2x32xf32>
    %98 = vector.extract_strided_slice %95 {offsets = [0, 32], sizes = [2, 32], strides = [1, 1]} : vector<2x128xf32> to vector<2x32xf32>
    %99 = vector.extract_strided_slice %96 {offsets = [0, 64], sizes = [2, 32], strides = [1, 1]} : vector<2x128xf32> to vector<2x32xf32>
    %100 = vector.extract_strided_slice %95 {offsets = [0, 96], sizes = [2, 32], strides = [1, 1]} : vector<2x128xf32> to vector<2x32xf32>
    %101 = arith.mulf %98, %64 : vector<2x32xf32>
    %102 = arith.mulf %97, %99 : vector<2x32xf32>
    %103 = arith.addf %101, %102 : vector<2x32xf32>
    %104 = math.tanh %103 : vector<2x32xf32>
    %105 = arith.mulf %100, %104 : vector<2x32xf32>
    %106 = tpu.concatenate %105, %90 in 1 : vector<2x32xf32>, vector<2x32xf32> -> vector<2x64xf32>
    %107 = arith.truncf %106 : vector<2x64xf32> to vector<2x64xbf16>
    %cst_16 = arith.constant dense<0.000000e+00> : vector<2x256xf32>
    %108 = tpu.matmul %107, %2, %cst_16 {dimension_numbers = #tpu.dot_dimension_numbers<[1], [0], [0], [1], [0, 0, 1, 1], [], []>} : vector<2x64xbf16>, vector<64x256xbf16>, vector<2x256xf32> -> vector<2x256xf32>
    %109 = vector.extract_strided_slice %108 {offsets = [0, 0], sizes = [2, 128], strides = [1, 1]} : vector<2x256xf32> to vector<2x128xf32>
    %110 = vector.extract_strided_slice %10 {offsets = [6, 0], sizes = [2, 128], strides = [1, 1]} : vector<16x128xf32> to vector<2x128xf32>
    %111 = arith.addf %109, %110 : vector<2x128xf32>
    %112 = vector.extract_strided_slice %108 {offsets = [0, 128], sizes = [2, 128], strides = [1, 1]} : vector<2x256xf32> to vector<2x128xf32>
    %113 = vector.broadcast %4 : vector<1x128xf32> to vector<2x128xf32>
    %114 = arith.addf %112, %113 : vector<2x128xf32>
    %115 = arith.negf %114 : vector<2x128xf32>
    %116 = math.exp %115 : vector<2x128xf32>
    %cst_17 = arith.constant 1.000000e+00 : f32
    %117 = vector.broadcast %cst_17 : f32 to vector<2x128xf32>
    %118 = arith.addf %117, %116 : vector<2x128xf32>
    %119 = arith.divf %117, %118 : vector<2x128xf32>
    %120 = math.tanh %114 : vector<2x128xf32>
    %121 = vector.extract_strided_slice %119 {offsets = [0, 0], sizes = [2, 32], strides = [1, 1]} : vector<2x128xf32> to vector<2x32xf32>
    %122 = vector.extract_strided_slice %119 {offsets = [0, 32], sizes = [2, 32], strides = [1, 1]} : vector<2x128xf32> to vector<2x32xf32>
    %123 = vector.extract_strided_slice %120 {offsets = [0, 64], sizes = [2, 32], strides = [1, 1]} : vector<2x128xf32> to vector<2x32xf32>
    %124 = vector.extract_strided_slice %119 {offsets = [0, 96], sizes = [2, 32], strides = [1, 1]} : vector<2x128xf32> to vector<2x32xf32>
    %125 = arith.mulf %122, %88 : vector<2x32xf32>
    %126 = arith.mulf %121, %123 : vector<2x32xf32>
    %127 = arith.addf %125, %126 : vector<2x32xf32>
    %128 = math.tanh %127 : vector<2x32xf32>
    %129 = arith.mulf %124, %128 : vector<2x32xf32>
    %130 = arith.negf %111 : vector<2x128xf32>
    %131 = math.exp %130 : vector<2x128xf32>
    %cst_18 = arith.constant 1.000000e+00 : f32
    %132 = vector.broadcast %cst_18 : f32 to vector<2x128xf32>
    %133 = arith.addf %132, %131 : vector<2x128xf32>
    %134 = arith.divf %132, %133 : vector<2x128xf32>
    %135 = math.tanh %111 : vector<2x128xf32>
    %136 = vector.extract_strided_slice %134 {offsets = [0, 0], sizes = [2, 32], strides = [1, 1]} : vector<2x128xf32> to vector<2x32xf32>
    %137 = vector.extract_strided_slice %134 {offsets = [0, 32], sizes = [2, 32], strides = [1, 1]} : vector<2x128xf32> to vector<2x32xf32>
    %138 = vector.extract_strided_slice %135 {offsets = [0, 64], sizes = [2, 32], strides = [1, 1]} : vector<2x128xf32> to vector<2x32xf32>
    %139 = vector.extract_strided_slice %134 {offsets = [0, 96], sizes = [2, 32], strides = [1, 1]} : vector<2x128xf32> to vector<2x32xf32>
    %140 = arith.mulf %137, %103 : vector<2x32xf32>
    %141 = arith.mulf %136, %138 : vector<2x32xf32>
    %142 = arith.addf %140, %141 : vector<2x32xf32>
    %143 = math.tanh %142 : vector<2x32xf32>
    %144 = arith.mulf %139, %143 : vector<2x32xf32>
    %145 = tpu.concatenate %144, %129 in 1 : vector<2x32xf32>, vector<2x32xf32> -> vector<2x64xf32>
    %146 = arith.truncf %145 : vector<2x64xf32> to vector<2x64xbf16>
    %cst_19 = arith.constant dense<0.000000e+00> : vector<2x256xf32>
    %147 = tpu.matmul %146, %2, %cst_19 {dimension_numbers = #tpu.dot_dimension_numbers<[1], [0], [0], [1], [0, 0, 1, 1], [], []>} : vector<2x64xbf16>, vector<64x256xbf16>, vector<2x256xf32> -> vector<2x256xf32>
    %148 = vector.extract_strided_slice %147 {offsets = [0, 0], sizes = [2, 128], strides = [1, 1]} : vector<2x256xf32> to vector<2x128xf32>
    %149 = vector.extract_strided_slice %10 {offsets = [8, 0], sizes = [2, 128], strides = [1, 1]} : vector<16x128xf32> to vector<2x128xf32>
    %150 = arith.addf %148, %149 : vector<2x128xf32>
    %151 = vector.extract_strided_slice %147 {offsets = [0, 128], sizes = [2, 128], strides = [1, 1]} : vector<2x256xf32> to vector<2x128xf32>
    %152 = vector.broadcast %4 : vector<1x128xf32> to vector<2x128xf32>
    %153 = arith.addf %151, %152 : vector<2x128xf32>
    %154 = arith.negf %153 : vector<2x128xf32>
    %155 = math.exp %154 : vector<2x128xf32>
    %cst_20 = arith.constant 1.000000e+00 : f32
    %156 = vector.broadcast %cst_20 : f32 to vector<2x128xf32>
    %157 = arith.addf %156, %155 : vector<2x128xf32>
    %158 = arith.divf %156, %157 : vector<2x128xf32>
    %159 = math.tanh %153 : vector<2x128xf32>
    %160 = vector.extract_strided_slice %158 {offsets = [0, 0], sizes = [2, 32], strides = [1, 1]} : vector<2x128xf32> to vector<2x32xf32>
    %161 = vector.extract_strided_slice %158 {offsets = [0, 32], sizes = [2, 32], strides = [1, 1]} : vector<2x128xf32> to vector<2x32xf32>
    %162 = vector.extract_strided_slice %159 {offsets = [0, 64], sizes = [2, 32], strides = [1, 1]} : vector<2x128xf32> to vector<2x32xf32>
    %163 = vector.extract_strided_slice %158 {offsets = [0, 96], sizes = [2, 32], strides = [1, 1]} : vector<2x128xf32> to vector<2x32xf32>
    %164 = arith.mulf %161, %127 : vector<2x32xf32>
    %165 = arith.mulf %160, %162 : vector<2x32xf32>
    %166 = arith.addf %164, %165 : vector<2x32xf32>
    %167 = math.tanh %166 : vector<2x32xf32>
    %168 = arith.mulf %163, %167 : vector<2x32xf32>
    %169 = arith.negf %150 : vector<2x128xf32>
    %170 = math.exp %169 : vector<2x128xf32>
    %cst_21 = arith.constant 1.000000e+00 : f32
    %171 = vector.broadcast %cst_21 : f32 to vector<2x128xf32>
    %172 = arith.addf %171, %170 : vector<2x128xf32>
    %173 = arith.divf %171, %172 : vector<2x128xf32>
    %174 = math.tanh %150 : vector<2x128xf32>
    %175 = vector.extract_strided_slice %173 {offsets = [0, 0], sizes = [2, 32], strides = [1, 1]} : vector<2x128xf32> to vector<2x32xf32>
    %176 = vector.extract_strided_slice %173 {offsets = [0, 32], sizes = [2, 32], strides = [1, 1]} : vector<2x128xf32> to vector<2x32xf32>
    %177 = vector.extract_strided_slice %174 {offsets = [0, 64], sizes = [2, 32], strides = [1, 1]} : vector<2x128xf32> to vector<2x32xf32>
    %178 = vector.extract_strided_slice %173 {offsets = [0, 96], sizes = [2, 32], strides = [1, 1]} : vector<2x128xf32> to vector<2x32xf32>
    %179 = arith.mulf %176, %142 : vector<2x32xf32>
    %180 = arith.mulf %175, %177 : vector<2x32xf32>
    %181 = arith.addf %179, %180 : vector<2x32xf32>
    %182 = math.tanh %181 : vector<2x32xf32>
    %183 = arith.mulf %178, %182 : vector<2x32xf32>
    %184 = tpu.concatenate %183, %168 in 1 : vector<2x32xf32>, vector<2x32xf32> -> vector<2x64xf32>
    %185 = arith.truncf %184 : vector<2x64xf32> to vector<2x64xbf16>
    %cst_22 = arith.constant dense<0.000000e+00> : vector<2x256xf32>
    %186 = tpu.matmul %185, %2, %cst_22 {dimension_numbers = #tpu.dot_dimension_numbers<[1], [0], [0], [1], [0, 0, 1, 1], [], []>} : vector<2x64xbf16>, vector<64x256xbf16>, vector<2x256xf32> -> vector<2x256xf32>
    %187 = vector.extract_strided_slice %186 {offsets = [0, 0], sizes = [2, 128], strides = [1, 1]} : vector<2x256xf32> to vector<2x128xf32>
    %188 = vector.extract_strided_slice %10 {offsets = [10, 0], sizes = [2, 128], strides = [1, 1]} : vector<16x128xf32> to vector<2x128xf32>
    %189 = arith.addf %187, %188 : vector<2x128xf32>
    %190 = vector.extract_strided_slice %186 {offsets = [0, 128], sizes = [2, 128], strides = [1, 1]} : vector<2x256xf32> to vector<2x128xf32>
    %191 = vector.broadcast %4 : vector<1x128xf32> to vector<2x128xf32>
    %192 = arith.addf %190, %191 : vector<2x128xf32>
    %193 = arith.negf %192 : vector<2x128xf32>
    %194 = math.exp %193 : vector<2x128xf32>
    %cst_23 = arith.constant 1.000000e+00 : f32
    %195 = vector.broadcast %cst_23 : f32 to vector<2x128xf32>
    %196 = arith.addf %195, %194 : vector<2x128xf32>
    %197 = arith.divf %195, %196 : vector<2x128xf32>
    %198 = math.tanh %192 : vector<2x128xf32>
    %199 = vector.extract_strided_slice %197 {offsets = [0, 0], sizes = [2, 32], strides = [1, 1]} : vector<2x128xf32> to vector<2x32xf32>
    %200 = vector.extract_strided_slice %197 {offsets = [0, 32], sizes = [2, 32], strides = [1, 1]} : vector<2x128xf32> to vector<2x32xf32>
    %201 = vector.extract_strided_slice %198 {offsets = [0, 64], sizes = [2, 32], strides = [1, 1]} : vector<2x128xf32> to vector<2x32xf32>
    %202 = vector.extract_strided_slice %197 {offsets = [0, 96], sizes = [2, 32], strides = [1, 1]} : vector<2x128xf32> to vector<2x32xf32>
    %203 = arith.mulf %200, %166 : vector<2x32xf32>
    %204 = arith.mulf %199, %201 : vector<2x32xf32>
    %205 = arith.addf %203, %204 : vector<2x32xf32>
    %206 = math.tanh %205 : vector<2x32xf32>
    %207 = arith.mulf %202, %206 : vector<2x32xf32>
    %208 = arith.negf %189 : vector<2x128xf32>
    %209 = math.exp %208 : vector<2x128xf32>
    %cst_24 = arith.constant 1.000000e+00 : f32
    %210 = vector.broadcast %cst_24 : f32 to vector<2x128xf32>
    %211 = arith.addf %210, %209 : vector<2x128xf32>
    %212 = arith.divf %210, %211 : vector<2x128xf32>
    %213 = math.tanh %189 : vector<2x128xf32>
    %214 = vector.extract_strided_slice %212 {offsets = [0, 0], sizes = [2, 32], strides = [1, 1]} : vector<2x128xf32> to vector<2x32xf32>
    %215 = vector.extract_strided_slice %212 {offsets = [0, 32], sizes = [2, 32], strides = [1, 1]} : vector<2x128xf32> to vector<2x32xf32>
    %216 = vector.extract_strided_slice %213 {offsets = [0, 64], sizes = [2, 32], strides = [1, 1]} : vector<2x128xf32> to vector<2x32xf32>
    %217 = vector.extract_strided_slice %212 {offsets = [0, 96], sizes = [2, 32], strides = [1, 1]} : vector<2x128xf32> to vector<2x32xf32>
    %218 = arith.mulf %215, %181 : vector<2x32xf32>
    %219 = arith.mulf %214, %216 : vector<2x32xf32>
    %220 = arith.addf %218, %219 : vector<2x32xf32>
    %221 = math.tanh %220 : vector<2x32xf32>
    %222 = arith.mulf %217, %221 : vector<2x32xf32>
    %223 = tpu.concatenate %222, %207 in 1 : vector<2x32xf32>, vector<2x32xf32> -> vector<2x64xf32>
    %224 = arith.truncf %223 : vector<2x64xf32> to vector<2x64xbf16>
    %cst_25 = arith.constant dense<0.000000e+00> : vector<2x256xf32>
    %225 = tpu.matmul %224, %2, %cst_25 {dimension_numbers = #tpu.dot_dimension_numbers<[1], [0], [0], [1], [0, 0, 1, 1], [], []>} : vector<2x64xbf16>, vector<64x256xbf16>, vector<2x256xf32> -> vector<2x256xf32>
    %226 = vector.extract_strided_slice %225 {offsets = [0, 0], sizes = [2, 128], strides = [1, 1]} : vector<2x256xf32> to vector<2x128xf32>
    %227 = vector.extract_strided_slice %10 {offsets = [12, 0], sizes = [2, 128], strides = [1, 1]} : vector<16x128xf32> to vector<2x128xf32>
    %228 = arith.addf %226, %227 : vector<2x128xf32>
    %229 = vector.extract_strided_slice %225 {offsets = [0, 128], sizes = [2, 128], strides = [1, 1]} : vector<2x256xf32> to vector<2x128xf32>
    %230 = vector.broadcast %4 : vector<1x128xf32> to vector<2x128xf32>
    %231 = arith.addf %229, %230 : vector<2x128xf32>
    %232 = arith.negf %231 : vector<2x128xf32>
    %233 = math.exp %232 : vector<2x128xf32>
    %cst_26 = arith.constant 1.000000e+00 : f32
    %234 = vector.broadcast %cst_26 : f32 to vector<2x128xf32>
    %235 = arith.addf %234, %233 : vector<2x128xf32>
    %236 = arith.divf %234, %235 : vector<2x128xf32>
    %237 = math.tanh %231 : vector<2x128xf32>
    %238 = vector.extract_strided_slice %236 {offsets = [0, 0], sizes = [2, 32], strides = [1, 1]} : vector<2x128xf32> to vector<2x32xf32>
    %239 = vector.extract_strided_slice %236 {offsets = [0, 32], sizes = [2, 32], strides = [1, 1]} : vector<2x128xf32> to vector<2x32xf32>
    %240 = vector.extract_strided_slice %237 {offsets = [0, 64], sizes = [2, 32], strides = [1, 1]} : vector<2x128xf32> to vector<2x32xf32>
    %241 = vector.extract_strided_slice %236 {offsets = [0, 96], sizes = [2, 32], strides = [1, 1]} : vector<2x128xf32> to vector<2x32xf32>
    %242 = arith.mulf %239, %205 : vector<2x32xf32>
    %243 = arith.mulf %238, %240 : vector<2x32xf32>
    %244 = arith.addf %242, %243 : vector<2x32xf32>
    %245 = math.tanh %244 : vector<2x32xf32>
    %246 = arith.mulf %241, %245 : vector<2x32xf32>
    %247 = arith.negf %228 : vector<2x128xf32>
    %248 = math.exp %247 : vector<2x128xf32>
    %cst_27 = arith.constant 1.000000e+00 : f32
    %249 = vector.broadcast %cst_27 : f32 to vector<2x128xf32>
    %250 = arith.addf %249, %248 : vector<2x128xf32>
    %251 = arith.divf %249, %250 : vector<2x128xf32>
    %252 = math.tanh %228 : vector<2x128xf32>
    %253 = vector.extract_strided_slice %251 {offsets = [0, 0], sizes = [2, 32], strides = [1, 1]} : vector<2x128xf32> to vector<2x32xf32>
    %254 = vector.extract_strided_slice %251 {offsets = [0, 32], sizes = [2, 32], strides = [1, 1]} : vector<2x128xf32> to vector<2x32xf32>
    %255 = vector.extract_strided_slice %252 {offsets = [0, 64], sizes = [2, 32], strides = [1, 1]} : vector<2x128xf32> to vector<2x32xf32>
    %256 = vector.extract_strided_slice %251 {offsets = [0, 96], sizes = [2, 32], strides = [1, 1]} : vector<2x128xf32> to vector<2x32xf32>
    %257 = arith.mulf %254, %220 : vector<2x32xf32>
    %258 = arith.mulf %253, %255 : vector<2x32xf32>
    %259 = arith.addf %257, %258 : vector<2x32xf32>
    %260 = math.tanh %259 : vector<2x32xf32>
    %261 = arith.mulf %256, %260 : vector<2x32xf32>
    %262 = tpu.concatenate %261, %246 in 1 : vector<2x32xf32>, vector<2x32xf32> -> vector<2x64xf32>
    %263 = arith.truncf %262 : vector<2x64xf32> to vector<2x64xbf16>
    %cst_28 = arith.constant dense<0.000000e+00> : vector<2x256xf32>
    %264 = tpu.matmul %263, %2, %cst_28 {dimension_numbers = #tpu.dot_dimension_numbers<[1], [0], [0], [1], [0, 0, 1, 1], [], []>} : vector<2x64xbf16>, vector<64x256xbf16>, vector<2x256xf32> -> vector<2x256xf32>
    %265 = vector.extract_strided_slice %264 {offsets = [0, 0], sizes = [2, 128], strides = [1, 1]} : vector<2x256xf32> to vector<2x128xf32>
    %266 = vector.extract_strided_slice %10 {offsets = [14, 0], sizes = [2, 128], strides = [1, 1]} : vector<16x128xf32> to vector<2x128xf32>
    %267 = arith.addf %265, %266 : vector<2x128xf32>
    %268 = vector.extract_strided_slice %264 {offsets = [0, 128], sizes = [2, 128], strides = [1, 1]} : vector<2x256xf32> to vector<2x128xf32>
    %269 = vector.broadcast %4 : vector<1x128xf32> to vector<2x128xf32>
    %270 = arith.addf %268, %269 : vector<2x128xf32>
    %271 = arith.negf %270 : vector<2x128xf32>
    %272 = math.exp %271 : vector<2x128xf32>
    %cst_29 = arith.constant 1.000000e+00 : f32
    %273 = vector.broadcast %cst_29 : f32 to vector<2x128xf32>
    %274 = arith.addf %273, %272 : vector<2x128xf32>
    %275 = arith.divf %273, %274 : vector<2x128xf32>
    %276 = math.tanh %270 : vector<2x128xf32>
    %277 = vector.extract_strided_slice %275 {offsets = [0, 0], sizes = [2, 32], strides = [1, 1]} : vector<2x128xf32> to vector<2x32xf32>
    %278 = vector.extract_strided_slice %275 {offsets = [0, 32], sizes = [2, 32], strides = [1, 1]} : vector<2x128xf32> to vector<2x32xf32>
    %279 = vector.extract_strided_slice %276 {offsets = [0, 64], sizes = [2, 32], strides = [1, 1]} : vector<2x128xf32> to vector<2x32xf32>
    %280 = vector.extract_strided_slice %275 {offsets = [0, 96], sizes = [2, 32], strides = [1, 1]} : vector<2x128xf32> to vector<2x32xf32>
    %281 = arith.mulf %278, %244 : vector<2x32xf32>
    %282 = arith.mulf %277, %279 : vector<2x32xf32>
    %283 = arith.addf %281, %282 : vector<2x32xf32>
    %284 = math.tanh %283 : vector<2x32xf32>
    %285 = arith.mulf %280, %284 : vector<2x32xf32>
    %286 = arith.negf %267 : vector<2x128xf32>
    %287 = math.exp %286 : vector<2x128xf32>
    %cst_30 = arith.constant 1.000000e+00 : f32
    %288 = vector.broadcast %cst_30 : f32 to vector<2x128xf32>
    %289 = arith.addf %288, %287 : vector<2x128xf32>
    %290 = arith.divf %288, %289 : vector<2x128xf32>
    %291 = math.tanh %267 : vector<2x128xf32>
    %292 = vector.extract_strided_slice %290 {offsets = [0, 0], sizes = [2, 32], strides = [1, 1]} : vector<2x128xf32> to vector<2x32xf32>
    %293 = vector.extract_strided_slice %290 {offsets = [0, 32], sizes = [2, 32], strides = [1, 1]} : vector<2x128xf32> to vector<2x32xf32>
    %294 = vector.extract_strided_slice %291 {offsets = [0, 64], sizes = [2, 32], strides = [1, 1]} : vector<2x128xf32> to vector<2x32xf32>
    %295 = vector.extract_strided_slice %290 {offsets = [0, 96], sizes = [2, 32], strides = [1, 1]} : vector<2x128xf32> to vector<2x32xf32>
    %296 = arith.mulf %293, %259 : vector<2x32xf32>
    %297 = arith.mulf %292, %294 : vector<2x32xf32>
    %298 = arith.addf %296, %297 : vector<2x32xf32>
    %299 = math.tanh %298 : vector<2x32xf32>
    %300 = arith.mulf %295, %299 : vector<2x32xf32>
    %301 = tpu.concatenate %300, %285 in 1 : vector<2x32xf32>, vector<2x32xf32> -> vector<2x64xf32>
    %302 = arith.truncf %301 : vector<2x64xf32> to vector<2x64xbf16>
    %cst_31 = arith.constant dense<0.000000e+00> : vector<2x256xf32>
    %303 = tpu.matmul %302, %2, %cst_31 {dimension_numbers = #tpu.dot_dimension_numbers<[1], [0], [0], [1], [0, 0, 1, 1], [], []>} : vector<2x64xbf16>, vector<64x256xbf16>, vector<2x256xf32> -> vector<2x256xf32>
    %304 = vector.extract_strided_slice %303 {offsets = [0, 128], sizes = [2, 128], strides = [1, 1]} : vector<2x256xf32> to vector<2x128xf32>
    %305 = vector.broadcast %4 : vector<1x128xf32> to vector<2x128xf32>
    %306 = arith.addf %304, %305 : vector<2x128xf32>
    %307 = arith.negf %306 : vector<2x128xf32>
    %308 = math.exp %307 : vector<2x128xf32>
    %cst_32 = arith.constant 1.000000e+00 : f32
    %309 = vector.broadcast %cst_32 : f32 to vector<2x128xf32>
    %310 = arith.addf %309, %308 : vector<2x128xf32>
    %311 = arith.divf %309, %310 : vector<2x128xf32>
    %312 = math.tanh %306 : vector<2x128xf32>
    %313 = vector.extract_strided_slice %311 {offsets = [0, 0], sizes = [2, 32], strides = [1, 1]} : vector<2x128xf32> to vector<2x32xf32>
    %314 = vector.extract_strided_slice %311 {offsets = [0, 32], sizes = [2, 32], strides = [1, 1]} : vector<2x128xf32> to vector<2x32xf32>
    %315 = vector.extract_strided_slice %312 {offsets = [0, 64], sizes = [2, 32], strides = [1, 1]} : vector<2x128xf32> to vector<2x32xf32>
    %316 = vector.extract_strided_slice %311 {offsets = [0, 96], sizes = [2, 32], strides = [1, 1]} : vector<2x128xf32> to vector<2x32xf32>
    %317 = arith.mulf %314, %283 : vector<2x32xf32>
    %318 = arith.mulf %313, %315 : vector<2x32xf32>
    %319 = arith.addf %317, %318 : vector<2x32xf32>
    %320 = math.tanh %319 : vector<2x32xf32>
    %321 = arith.mulf %316, %320 : vector<2x32xf32>
    %322 = tpu.concatenate %51, %90, %129, %168, %207, %246, %285, %321 in 0 : vector<2x32xf32>, vector<2x32xf32>, vector<2x32xf32>, vector<2x32xf32>, vector<2x32xf32>, vector<2x32xf32>, vector<2x32xf32>, vector<2x32xf32> -> vector<16x32xf32>
    %cst_33 = arith.constant dense<0.000000e+00> : vector<16x128xf32>
    %323 = tpu.matmul %322, %5, %cst_33 {dimension_numbers = #tpu.dot_dimension_numbers<[1], [0], [0], [1], [0, 0, 1, 1], [], []>} : vector<16x32xf32>, vector<32x128xf32>, vector<16x128xf32> -> vector<16x128xf32>
    %324 = vector.broadcast %6 : vector<1x128xf32> to vector<16x128xf32>
    %325 = arith.addf %323, %324 : vector<16x128xf32>
    %cst_34 = arith.constant dense<0xFF800000> : vector<16xf32>
    %326 = vector.multi_reduction <maximumf>, %325, %cst_34 [1] : vector<16x128xf32> to vector<16xf32>
    %327 = vector.shape_cast %326 : vector<16xf32> to vector<16x1xf32>
    %328 = vector.broadcast %327 : vector<16x1xf32> to vector<16x128xf32>
    %329 = arith.subf %325, %328 : vector<16x128xf32>
    %330 = math.exp %329 : vector<16x128xf32>
    %cst_35 = arith.constant dense<0.000000e+00> : vector<16xf32>
    %331 = vector.multi_reduction <add>, %330, %cst_35 [1] : vector<16x128xf32> to vector<16xf32>
    %332 = vector.shape_cast %331 : vector<16xf32> to vector<16x1xf32>
    %333 = math.log %332 : vector<16x1xf32>
    %334 = arith.addf %333, %327 : vector<16x1xf32>
    %335 = vector.broadcast %334 : vector<16x1xf32> to vector<16x128xf32>
    %336 = arith.subf %325, %335 : vector<16x128xf32>
    %c0_36 = arith.constant 0 : index
    %c0_37 = arith.constant 0 : index
    %337 = vector.load %arg2[%c0_36, %c0_37] : memref<16x128xf32, #tpu.memory_space<vmem>>, vector<16x128xf32>
    tpu.vector_store %arg2[%c0_36, %c0_37], %336 {strides = array<i32>} : memref<16x128xf32, #tpu.memory_space<vmem>>, vector<16x128xf32>,
    return
  }
}

</mosaic_0001>

<llo_original>
// kernel: tpu_custom_call.1
$region0: #{tpu_custom_call.1}
  #allocation0 [shape = 'u32[]', space=smem, size = 0x4, offset = 0x4, fixed_abs, tag = 'smem constant byte address 0x4 - core index']
  #allocation1 [shape = 'u32[144,128]{1,0:T(1,128)}', space=vmem, size = 0x12000, scoped, tag = 'internal scratch']
  %s0 = inlined_call_operand.hbm [shape: f32[16,32], index: 0, kind: input, shape index: {}]
  %s1 = inlined_call_operand.hbm [shape: f32[144,256], index: 1, kind: input, shape index: {}]
  %s2 = inlined_call_operand.hbm [shape: f32[16,128], index: 2, kind: output, shape index: {}]
  %s3 = sld [smem:[#allocation0]]
  $region26: #{tpu_custom_call.1} parent=0
    _
  %s5 = ssub.s32 1, %s3
  %s6 = scalar_select 0, %s5, %s3
  $region1: #{tpu_custom_call.1} parent=0
    #allocation2 [shape = 'u8[8192]{0}', space=vmem, size = 0x2000, scoped, tag = 'input window, operand 0, single buffered']
    #allocation3 [shape = 's32[1]{0}', space=sflag, size = 0x4, scoped, tag = 'scoped memory for tpu_custom_call.1']
    #allocation4 [shape = 's32[1]{0}', space=sflag, size = 0x4, scoped, tag = 'scoped memory for tpu_custom_call.1']
    #allocation5 [shape = 'u8[147456]{0}', space=vmem, size = 0x24000, scoped, tag = 'input window, operand 1, single buffered']
    #allocation6 [shape = 's32[1]{0}', space=sflag, size = 0x4, scoped, tag = 'scoped memory for tpu_custom_call.1']
    #allocation7 [shape = 'u8[8192]{0}', space=vmem, size = 0x2000, scoped, tag = 'output window, operand 0, single buffered']
    %7 = vsyncpa [#allocation3], 0
    %8 = vsyncpa [#allocation6], 0
    %9 = vsyncpa [#allocation4], 0
    // Predicated region
    $region2: #{tpu_custom_call.1} parent=1 // pred_check
      _
    $region3: #{tpu_custom_call.1} parent=1 // pred_check_branch
      %11 = sbr.rel (0) target = $region5
    $region4: #{tpu_custom_call.1} parent=1 // pred_region
      %s13 = ssub.s32 256, 256
      %14 = vsyncadd [#allocation3], %s13
      %s15 = sshll.u32 [#allocation2], 4
      %s16 = int_to_ptr.vmem [resolvable:$true] %s15
      %21 = dma.hbm_to_vmem [thread:$0]  %s0, 256, %s16, [#allocation3], 128, 128, 8
    $region5: #{tpu_custom_call.1} parent=1 // pred_fallthru
      _
    // Predicated region
    $region6: #{tpu_custom_call.1} parent=1 // pred_check
      _
    $region7: #{tpu_custom_call.1} parent=1 // pred_check_branch
      %23 = sbr.rel (0) target = $region9
    $region8: #{tpu_custom_call.1} parent=1 // pred_region
      %s25 = ssub.s32 4608, 4608
      %26 = vsyncadd [#allocation6], %s25
      %s27 = sshll.u32 [#allocation5], 4
      %s28 = int_to_ptr.vmem [resolvable:$true] %s27
      %33 = dma.hbm_to_vmem [thread:$0]  %s1, 4608, %s28, [#allocation6], 256, 256, 16
    $region9: #{tpu_custom_call.1} parent=1 // pred_fallthru
      _
    // Predicated region
    $region10: #{tpu_custom_call.1} parent=1 // pred_check
      _
    $region11: #{tpu_custom_call.1} parent=1 // pred_check_branch
      %35 = sbr.rel (0) target = $region13
    $region12: #{tpu_custom_call.1} parent=1 // pred_region
      %36 = dma.done [#allocation3], 256
    $region13: #{tpu_custom_call.1} parent=1 // pred_fallthru
      _
    // Predicated region
    $region14: #{tpu_custom_call.1} parent=1 // pred_check
      _
    $region15: #{tpu_custom_call.1} parent=1 // pred_check_branch
      %38 = sbr.rel (0) target = $region17
    $region16: #{tpu_custom_call.1} parent=1 // pred_region
      %39 = dma.done [#allocation6], 4608
    $region17: #{tpu_custom_call.1} parent=1 // pred_fallthru
      _
    %v41 = vld [vmem:[#allocation5] sm:$0xff]
    %v42 = vld [vmem:[#allocation5 + $0x10] sm:$0xff]
    %v43 = vld [vmem:[#allocation5 + $0x20] sm:$0xff]
    %v44 = vld [vmem:[#allocation5 + $0x30] sm:$0xff]
    %v45 = vld [vmem:[#allocation5 + $0x40] sm:$0xff]
    %v46 = vld [vmem:[#allocation5 + $0x48] sm:$0xff]
    %v47 = vld [vmem:[#allocation5 + $0x50] sm:$0xff]
    %v48 = vld [vmem:[#allocation5 + $0x58] sm:$0xff]
    %v49 = vld [vmem:[#allocation5 + $0x60] sm:$0xff]
    %v50 = vld [vmem:[#allocation5 + $0x68] sm:$0xff]
    %v51 = vld [vmem:[#allocation5 + $0x70] sm:$0xff]
    %v52 = vld [vmem:[#allocation5 + $0x78] sm:$0xff]
    %v53 = vld [vmem:[#allocation5 + $0x80] sm:$0xff]
    %v54 = vld [vmem:[#allocation5 + $0x88] sm:$0xff]
    %v55 = vld [vmem:[#allocation5 + $0x90] sm:$0xff]
    %v56 = vld [vmem:[#allocation5 + $0x98] sm:$0xff]
    %v57 = vld [vmem:[#allocation5 + $0xa0] sm:$0xff]
    %v58 = vld [vmem:[#allocation5 + $0xa8] sm:$0xff]
    %v59 = vld [vmem:[#allocation5 + $0xb0] sm:$0xff]
    %v60 = vld [vmem:[#allocation5 + $0xb8] sm:$0xff]
    %v61 = vpack.c.bf16 %v47, %v45
    %v62 = vpack.c.bf16 %v48, %v46
    %v63 = vpack.c.bf16 %v51, %v49
    %v64 = vpack.c.bf16 %v52, %v50
    %v65 = vpack.c.bf16 %v55, %v53
    %v66 = vpack.c.bf16 %v56, %v54
    %v67 = vpack.c.bf16 %v59, %v57
    %v68 = vpack.c.bf16 %v60, %v58
    %v69 = vld [vmem:[#allocation5 + $0xc0] ss:$0 sm:$0xff]
    %v70 = vld [vmem:[#allocation5 + $0xc8] ss:$0 sm:$0xff]
    %v71 = vld [vmem:[#allocation5 + $0xd0] sm:$0xff]
    %v72 = vld [vmem:[#allocation5 + $0xe0] sm:$0xff]
    %v73 = vld [vmem:[#allocation5 + $0xf0] sm:$0xff]
    %v74 = vld [vmem:[#allocation5 + $0x100] sm:$0xff]
    %v75 = vld [vmem:[#allocation5 + $0x110] ss:$0 sm:$0xff]
    %v76 = vld [vmem:[#allocation2] sm:$0xff]
    %v77 = vld [vmem:[#allocation2 + $0x8] sm:$0xff]
    %vm78 = vcmask 261120
    %v80 = vsel %vm78, %v76, 0
    %v83 = vsel %vm78, %v77, 0
    %85 = vmatprep.subr.mxu0 0.0
    %86 = vmatpush1.msra.mxu0 0.0
    %87 = vmatprep.subr.mxu0 0.0
    %88 = vmatpush1.msra.mxu0 0.0
    %89 = vmatprep.subr.mxu0 0.0
    %90 = vmatpush1.msra.mxu0 0.0
    %91 = vmatprep.subr.mxu0 0.0
    %92 = vmatpush1.msra.mxu0 0.0
    %93 = vmatprep.subr.mxu0 0.0
    %94 = vmatpush1.msra.mxu0 0.0
    %95 = vmatprep.subr.mxu0 0.0
    %96 = vmatpush1.msra.mxu0 0.0
    %97 = vmatprep.subr.mxu0 0.0
    %98 = vmatpush1.msra.mxu0 0.0
    %99 = vmatprep.subr.mxu0 0.0
    %100 = vmatpush1.msra.mxu0 0.0
    %101 = vmatprep.subr.mxu0 0.0
    %102 = vmatpush1.msra.mxu0 0.0
    %103 = vmatprep.subr.mxu0 0.0
    %104 = vmatpush1.msra.mxu0 0.0
    %105 = vmatprep.subr.mxu0 0.0
    %106 = vmatpush1.msra.mxu0 0.0
    %107 = vmatprep.subr.mxu0 0.0
    %108 = vmatpush1.msra.mxu0 0.0
    %109 = vmatprep.subr.mxu0 0.0
    %110 = vmatpush1.msra.mxu0 %v44
    %111 = vmatprep.subr.mxu0 0.0
    %112 = vmatpush1.msra.mxu0 %v43
    %113 = vmatprep.subr.mxu0 0.0
    %114 = vmatpush1.msra.mxu0 %v42
    %115 = vmatprep.subr.mxu0 0.0
    %116 = vmatpush1.msra.mxu0 %v41
    %117 = vmatprep.subr.mxu0 0.0
    %118 = vmatpush2.msra.mxu0 0.0
    %119 = vmatprep.subr.mxu0 0.0
    %120 = vmatpush2.msra.mxu0 0.0
    %121 = vmatprep.subr.mxu0 0.0
    %122 = vmatpush2.msra.mxu0 0.0
    %123 = vmatprep.subr.mxu0 0.0
    %124 = vmatpush2.msra.mxu0 0.0
    %125 = vmatprep.subr.mxu0 0.0
    %126 = vmatpush2.msra.mxu0 0.0
    %127 = vmatprep.subr.mxu0 0.0
    %128 = vmatpush2.msra.mxu0 0.0
    %129 = vmatprep.subr.mxu0 0.0
    %130 = vmatpush2.msra.mxu0 0.0
    %131 = vmatprep.subr.mxu0 0.0
    %132 = vmatpush2.msra.mxu0 0.0
    %133 = vmatprep.subr.mxu0 0.0
    %134 = vmatpush2.msra.mxu0 0.0
    %135 = vmatprep.subr.mxu0 0.0
    %136 = vmatpush2.msra.mxu0 0.0
    %137 = vmatprep.subr.mxu0 0.0
    %138 = vmatpush2.msra.mxu0 0.0
    %139 = vmatprep.subr.mxu0 0.0
    %140 = vmatpush2.msra.mxu0 0.0
    %141 = vmatprep.subr.mxu0 0.0
    %142 = vmatpush2.msra.mxu0 0.0
    %143 = vmatprep.subr.mxu0 0.0
    %144 = vmatpush2.msra.mxu0 0.0
    %145 = vmatprep.subr.mxu0 0.0
    %146 = vmatpush2.msra.mxu0 0.0
    %147 = vmatprep.subr.mxu0 0.0
    %148 = vmatpush2.msra.mxu0 0.0
    %149 = vmatprep.mubr.f32.mxu0 0.0
    %150 = vmatmul.mubr.f32.gmra.mxu0 %v80
    %v151 = vpop.f32.mrf.mxu0
    %v152 = vadd.f32 %v69, %v151
    %v153 = vpop.f32.mrf.mxu0
    %154 = vmatprep.mubr.f32.mxu0 0.0
    %155 = vmatmul.mubr.f32.gmra.mxu0 %v83
    %v156 = vpop.f32.mrf.mxu0
    %v157 = vadd.f32 %v69, %v156
    %v158 = vpop.f32.mrf.mxu0
    %159 = vdwg.mxu0
    %v160 = vxor.u32 %v152, 2147483648
    %v161 = vmul.f32 %v160, 1.442695
    %v162 = vpow.pop %v161
    %v163 = vadd.f32 %v162, 1.0
    %v164 = vrcp.pop %v163
    %v165 = vmul.f32 1.0, %v164
    %v166 = vtanh.pop %v152
    %v167 = vmul.f32 %v165, 0.0
    %169 = vrot.lane.b32.xlu0 %v166, 64
    %v170 = vpop.permute.xlu0 %169
    %v172 = vmul.f32 %v165, %v170
    %174 = vrot.lane.b32.xlu0 %v172, 32
    %v175 = vpop.permute.xlu0 %174
    %v177 = vadd.f32 %v167, %v175
    %v178 = vtanh.pop %v177
    %180 = vrot.lane.b32.xlu0 %v178, 64
    %v181 = vpop.permute.xlu0 %180
    %v183 = vmul.f32 %v165, %v181
    %185 = vrot.lane.b32.xlu0 %v183, 32
    %v186 = vpop.permute.xlu0 %185
    %v188 = vsel %vm78, %v186, 0.0
    %v189 = vpack.c.bf16 %v188, %v188
    %vm190 = vcmask 523264
    %v192 = vsel %vm190, %v189, 0
    %194 = vmatprep.subr.bf16.mxu0 0
    %195 = vmatpush1.bf16.msra.mxu0 0
    %196 = vmatprep.subr.bf16.mxu0 0
    %197 = vmatpush1.bf16.msra.mxu0 0
    %198 = vmatprep.subr.bf16.mxu0 0
    %199 = vmatpush1.bf16.msra.mxu0 0
    %200 = vmatprep.subr.bf16.mxu0 0
    %201 = vmatpush1.bf16.msra.mxu0 0
    %202 = vmatprep.subr.bf16.mxu0 %v68
    %203 = vmatpush1.bf16.msra.mxu0 %v67
    %204 = vmatprep.subr.bf16.mxu0 %v66
    %205 = vmatpush1.bf16.msra.mxu0 %v65
    %206 = vmatprep.subr.bf16.mxu0 %v64
    %207 = vmatpush1.bf16.msra.mxu0 %v63
    %208 = vmatprep.subr.bf16.mxu0 %v62
    %209 = vmatpush1.bf16.msra.mxu0 %v61
    %210 = vmatprep.subr.bf16.mxu0 0
    %211 = vmatpush2.bf16.msra.mxu0 0
    %212 = vmatprep.subr.bf16.mxu0 0
    %213 = vmatpush2.bf16.msra.mxu0 0
    %214 = vmatprep.subr.bf16.mxu0 0
    %215 = vmatpush2.bf16.msra.mxu0 0
    %216 = vmatprep.subr.bf16.mxu0 0
    %217 = vmatpush2.bf16.msra.mxu0 0
    %218 = vmatprep.subr.bf16.mxu0 0
    %219 = vmatpush2.bf16.msra.mxu0 0
    %220 = vmatprep.subr.bf16.mxu0 0
    %221 = vmatpush2.bf16.msra.mxu0 0
    %222 = vmatprep.subr.bf16.mxu0 0
    %223 = vmatpush2.bf16.msra.mxu0 0
    %224 = vmatprep.subr.bf16.mxu0 0
    %225 = vmatpush2.bf16.msra.mxu0 0
    %226 = vmatprep.mubr.bf16.mxu0 0
    %227 = vmatmul.mubr.bf16.gmra.mxu0 %v192
    %v228 = vpop.f32.mrf.mxu0
    %v229 = vadd.f32 0.0, %v228
    %v230 = vpop.f32.mrf.mxu0
    %v231 = vadd.f32 0.0, %v230
    %v232 = vpop.f32.mrf.mxu0
    %v233 = vpop.f32.mrf.mxu0
    %234 = vdwg.mxu0
    %v236 = vrot.slane %v152, 2
    %v238 = vadd.f32 %v229, %v236
    %v239 = vadd.f32 %v231, %v70
    %v240 = vxor.u32 %v239, 2147483648
    %v241 = vmul.f32 %v240, 1.442695
    %v242 = vpow.pop %v241
    %v243 = vadd.f32 %v242, 1.0
    %v244 = vrcp.pop %v243
    %v245 = vmul.f32 1.0, %v244
    %v246 = vtanh.pop %v239
    %v247 = vmul.f32 %v245, 0.0
    %249 = vrot.lane.b32.xlu0 %v246, 64
    %v250 = vpop.permute.xlu0 %249
    %v252 = vmul.f32 %v245, %v250
    %254 = vrot.lane.b32.xlu0 %v252, 32
    %v255 = vpop.permute.xlu0 %254
    %v257 = vadd.f32 %v247, %v255
    %v258 = vtanh.pop %v257
    %260 = vrot.lane.b32.xlu0 %v258, 64
    %v261 = vpop.permute.xlu0 %260
    %v263 = vmul.f32 %v245, %v261
    %v264 = vxor.u32 %v238, 2147483648
    %v265 = vmul.f32 %v264, 1.442695
    %v266 = vpow.pop %v265
    %v267 = vadd.f32 %v266, 1.0
    %v268 = vrcp.pop %v267
    %v269 = vmul.f32 1.0, %v268
    %v270 = vtanh.pop %v238
    %v271 = vmul.f32 %v269, %v177
    %273 = vrot.lane.b32.xlu0 %v270, 64
    %v274 = vpop.permute.xlu0 %273
    %v276 = vmul.f32 %v269, %v274
    %278 = vrot.lane.b32.xlu0 %v276, 32
    %v279 = vpop.permute.xlu0 %278
    %v281 = vadd.f32 %v271, %v279
    %v282 = vtanh.pop %v281
    %284 = vrot.lane.b32.xlu0 %v282, 64
    %v285 = vpop.permute.xlu0 %284
    %v287 = vmul.f32 %v269, %v285
    %289 = vrot.lane.b32.xlu0 %v287, 32
    %v290 = vpop.permute.xlu0 %289
    %293 = vrot.lane.b32.xlu0 %v263, 64
    %v294 = vpop.permute.xlu0 %293
    %v296 = vsel %vm78, %v290, %v294
    %v297 = vpack.c.bf16 %v296, %v296
    %v299 = vsel %vm190, %v297, 0
    %301 = vmatprep.subr.bf16.mxu0 0
    %302 = vmatpush1.bf16.msra.mxu0 0
    %303 = vmatprep.subr.bf16.mxu0 0
    %304 = vmatpush1.bf16.msra.mxu0 0
    %305 = vmatprep.subr.bf16.mxu0 0
    %306 = vmatpush1.bf16.msra.mxu0 0
    %307 = vmatprep.subr.bf16.mxu0 0
    %308 = vmatpush1.bf16.msra.mxu0 0
    %309 = vmatprep.subr.bf16.mxu0 %v68
    %310 = vmatpush1.bf16.msra.mxu0 %v67
    %311 = vmatprep.subr.bf16.mxu0 %v66
    %312 = vmatpush1.bf16.msra.mxu0 %v65
    %313 = vmatprep.subr.bf16.mxu0 %v64
    %314 = vmatpush1.bf16.msra.mxu0 %v63
    %315 = vmatprep.subr.bf16.mxu0 %v62
    %316 = vmatpush1.bf16.msra.mxu0 %v61
    %317 = vmatprep.subr.bf16.mxu0 0
    %318 = vmatpush2.bf16.msra.mxu0 0
    %319 = vmatprep.subr.bf16.mxu0 0
    %320 = vmatpush2.bf16.msra.mxu0 0
    %321 = vmatprep.subr.bf16.mxu0 0
    %322 = vmatpush2.bf16.msra.mxu0 0
    %323 = vmatprep.subr.bf16.mxu0 0
    %324 = vmatpush2.bf16.msra.mxu0 0
    %325 = vmatprep.subr.bf16.mxu0 0
    %326 = vmatpush2.bf16.msra.mxu0 0
    %327 = vmatprep.subr.bf16.mxu0 0
    %328 = vmatpush2.bf16.msra.mxu0 0
    %329 = vmatprep.subr.bf16.mxu0 0
    %330 = vmatpush2.bf16.msra.mxu0 0
    %331 = vmatprep.subr.bf16.mxu0 0
    %332 = vmatpush2.bf16.msra.mxu0 0
    %333 = vmatprep.mubr.bf16.mxu0 0
    %334 = vmatmul.mubr.bf16.gmra.mxu0 %v299
    %v335 = vpop.f32.mrf.mxu0
    %v336 = vadd.f32 0.0, %v335
    %v337 = vpop.f32.mrf.mxu0
    %v338 = vadd.f32 0.0, %v337
    %v339 = vpop.f32.mrf.mxu0
    %v340 = vpop.f32.mrf.mxu0
    %341 = vdwg.mxu0
    %v342 = vrot.slane %v152, 4
    %v344 = vadd.f32 %v336, %v342
    %v345 = vadd.f32 %v338, %v70
    %v346 = vxor.u32 %v345, 2147483648
    %v347 = vmul.f32 %v346, 1.442695
    %v348 = vpow.pop %v347
    %v349 = vadd.f32 %v348, 1.0
    %v350 = vrcp.pop %v349
    %v351 = vmul.f32 1.0, %v350
    %v352 = vtanh.pop %v345
    %v353 = vmul.f32 %v351, %v257
    %355 = vrot.lane.b32.xlu0 %v352, 64
    %v356 = vpop.permute.xlu0 %355
    %v358 = vmul.f32 %v351, %v356
    %360 = vrot.lane.b32.xlu0 %v358, 32
    %v361 = vpop.permute.xlu0 %360
    %v363 = vadd.f32 %v353, %v361
    %v364 = vtanh.pop %v363
    %366 = vrot.lane.b32.xlu0 %v364, 64
    %v367 = vpop.permute.xlu0 %366
    %v369 = vmul.f32 %v351, %v367
    %v370 = vxor.u32 %v344, 2147483648
    %v371 = vmul.f32 %v370, 1.442695
    %v372 = vpow.pop %v371
    %v373 = vadd.f32 %v372, 1.0
    %v374 = vrcp.pop %v373
    %v375 = vmul.f32 1.0, %v374
    %v376 = vtanh.pop %v344
    %v377 = vmul.f32 %v375, %v281
    %379 = vrot.lane.b32.xlu0 %v376, 64
    %v380 = vpop.permute.xlu0 %379
    %v382 = vmul.f32 %v375, %v380
    %384 = vrot.lane.b32.xlu0 %v382, 32
    %v385 = vpop.permute.xlu0 %384
    %v387 = vadd.f32 %v377, %v385
    %v388 = vtanh.pop %v387
    %390 = vrot.lane.b32.xlu0 %v388, 64
    %v391 = vpop.permute.xlu0 %390
    %v393 = vmul.f32 %v375, %v391
    %395 = vrot.lane.b32.xlu0 %v393, 32
    %v396 = vpop.permute.xlu0 %395
    %399 = vrot.lane.b32.xlu0 %v369, 64
    %v400 = vpop.permute.xlu0 %399
    %v402 = vsel %vm78, %v396, %v400
    %v403 = vpack.c.bf16 %v402, %v402
    %v405 = vsel %vm190, %v403, 0
    %407 = vmatprep.subr.bf16.mxu0 0
    %408 = vmatpush1.bf16.msra.mxu0 0
    %409 = vmatprep.subr.bf16.mxu0 0
    %410 = vmatpush1.bf16.msra.mxu0 0
    %411 = vmatprep.subr.bf16.mxu0 0
    %412 = vmatpush1.bf16.msra.mxu0 0
    %413 = vmatprep.subr.bf16.mxu0 0
    %414 = vmatpush1.bf16.msra.mxu0 0
    %415 = vmatprep.subr.bf16.mxu0 %v68
    %416 = vmatpush1.bf16.msra.mxu0 %v67
    %417 = vmatprep.subr.bf16.mxu0 %v66
    %418 = vmatpush1.bf16.msra.mxu0 %v65
    %419 = vmatprep.subr.bf16.mxu0 %v64
    %420 = vmatpush1.bf16.msra.mxu0 %v63
    %421 = vmatprep.subr.bf16.mxu0 %v62
    %422 = vmatpush1.bf16.msra.mxu0 %v61
    %423 = vmatprep.subr.bf16.mxu0 0
    %424 = vmatpush2.bf16.msra.mxu0 0
    %425 = vmatprep.subr.bf16.mxu0 0
    %426 = vmatpush2.bf16.msra.mxu0 0
    %427 = vmatprep.subr.bf16.mxu0 0
    %428 = vmatpush2.bf16.msra.mxu0 0
    %429 = vmatprep.subr.bf16.mxu0 0
    %430 = vmatpush2.bf16.msra.mxu0 0
    %431 = vmatprep.subr.bf16.mxu0 0
    %432 = vmatpush2.bf16.msra.mxu0 0
    %433 = vmatprep.subr.bf16.mxu0 0
    %434 = vmatpush2.bf16.msra.mxu0 0
    %435 = vmatprep.subr.bf16.mxu0 0
    %436 = vmatpush2.bf16.msra.mxu0 0
    %437 = vmatprep.subr.bf16.mxu0 0
    %438 = vmatpush2.bf16.msra.mxu0 0
    %439 = vmatprep.mubr.bf16.mxu0 0
    %440 = vmatmul.mubr.bf16.gmra.mxu0 %v405
    %v441 = vpop.f32.mrf.mxu0
    %v442 = vadd.f32 0.0, %v441
    %v443 = vpop.f32.mrf.mxu0
    %v444 = vadd.f32 0.0, %v443
    %v445 = vpop.f32.mrf.mxu0
    %v446 = vpop.f32.mrf.mxu0
    %447 = vdwg.mxu0
    %v448 = vrot.slane %v152, 6
    %v450 = vadd.f32 %v442, %v448
    %v451 = vadd.f32 %v444, %v70
    %v452 = vxor.u32 %v451, 2147483648
    %v453 = vmul.f32 %v452, 1.442695
    %v454 = vpow.pop %v453
    %v455 = vadd.f32 %v454, 1.0
    %v456 = vrcp.pop %v455
    %v457 = vmul.f32 1.0, %v456
    %v458 = vtanh.pop %v451
    %v459 = vmul.f32 %v457, %v363
    %461 = vrot.lane.b32.xlu0 %v458, 64
    %v462 = vpop.permute.xlu0 %461
    %v464 = vmul.f32 %v457, %v462
    %466 = vrot.lane.b32.xlu0 %v464, 32
    %v467 = vpop.permute.xlu0 %466
    %v469 = vadd.f32 %v459, %v467
    %v470 = vtanh.pop %v469
    %472 = vrot.lane.b32.xlu0 %v470, 64
    %v473 = vpop.permute.xlu0 %472
    %v475 = vmul.f32 %v457, %v473
    %v476 = vxor.u32 %v450, 2147483648
    %v477 = vmul.f32 %v476, 1.442695
    %v478 = vpow.pop %v477
    %v479 = vadd.f32 %v478, 1.0
    %v480 = vrcp.pop %v479
    %v481 = vmul.f32 1.0, %v480
    %v482 = vtanh.pop %v450
    %v483 = vmul.f32 %v481, %v387
    %485 = vrot.lane.b32.xlu0 %v482, 64
    %v486 = vpop.permute.xlu0 %485
    %v488 = vmul.f32 %v481, %v486
    %490 = vrot.lane.b32.xlu0 %v488, 32
    %v491 = vpop.permute.xlu0 %490
    %v493 = vadd.f32 %v483, %v491
    %v494 = vtanh.pop %v493
    %496 = vrot.lane.b32.xlu0 %v494, 64
    %v497 = vpop.permute.xlu0 %496
    %v499 = vmul.f32 %v481, %v497
    %501 = vrot.lane.b32.xlu0 %v499, 32
    %v502 = vpop.permute.xlu0 %501
    %505 = vrot.lane.b32.xlu0 %v475, 64
    %v506 = vpop.permute.xlu0 %505
    %v508 = vsel %vm78, %v502, %v506
    %v509 = vpack.c.bf16 %v508, %v508
    %v511 = vsel %vm190, %v509, 0
    %513 = vmatprep.subr.bf16.mxu0 0
    %514 = vmatpush1.bf16.msra.mxu0 0
    %515 = vmatprep.subr.bf16.mxu0 0
    %516 = vmatpush1.bf16.msra.mxu0 0
    %517 = vmatprep.subr.bf16.mxu0 0
    %518 = vmatpush1.bf16.msra.mxu0 0
    %519 = vmatprep.subr.bf16.mxu0 0
    %520 = vmatpush1.bf16.msra.mxu0 0
    %521 = vmatprep.subr.bf16.mxu0 %v68
    %522 = vmatpush1.bf16.msra.mxu0 %v67
    %523 = vmatprep.subr.bf16.mxu0 %v66
    %524 = vmatpush1.bf16.msra.mxu0 %v65
    %525 = vmatprep.subr.bf16.mxu0 %v64
    %526 = vmatpush1.bf16.msra.mxu0 %v63
    %527 = vmatprep.subr.bf16.mxu0 %v62
    %528 = vmatpush1.bf16.msra.mxu0 %v61
    %529 = vmatprep.subr.bf16.mxu0 0
    %530 = vmatpush2.bf16.msra.mxu0 0
    %531 = vmatprep.subr.bf16.mxu0 0
    %532 = vmatpush2.bf16.msra.mxu0 0
    %533 = vmatprep.subr.bf16.mxu0 0
    %534 = vmatpush2.bf16.msra.mxu0 0
    %535 = vmatprep.subr.bf16.mxu0 0
    %536 = vmatpush2.bf16.msra.mxu0 0
    %537 = vmatprep.subr.bf16.mxu0 0
    %538 = vmatpush2.bf16.msra.mxu0 0
    %539 = vmatprep.subr.bf16.mxu0 0
    %540 = vmatpush2.bf16.msra.mxu0 0
    %541 = vmatprep.subr.bf16.mxu0 0
    %542 = vmatpush2.bf16.msra.mxu0 0
    %543 = vmatprep.subr.bf16.mxu0 0
    %544 = vmatpush2.bf16.msra.mxu0 0
    %545 = vmatprep.mubr.bf16.mxu0 0
    %546 = vmatmul.mubr.bf16.gmra.mxu0 %v511
    %v547 = vpop.f32.mrf.mxu0
    %v548 = vadd.f32 0.0, %v547
    %v549 = vpop.f32.mrf.mxu0
    %v550 = vadd.f32 0.0, %v549
    %v551 = vpop.f32.mrf.mxu0
    %v552 = vpop.f32.mrf.mxu0
    %553 = vdwg.mxu0
    %v554 = vadd.f32 %v548, %v157
    %v555 = vadd.f32 %v550, %v70
    %v556 = vxor.u32 %v555, 2147483648
    %v557 = vmul.f32 %v556, 1.442695
    %v558 = vpow.pop %v557
    %v559 = vadd.f32 %v558, 1.0
    %v560 = vrcp.pop %v559
    %v561 = vmul.f32 1.0, %v560
    %v562 = vtanh.pop %v555
    %v563 = vmul.f32 %v561, %v469
    %565 = vrot.lane.b32.xlu0 %v562, 64
    %v566 = vpop.permute.xlu0 %565
    %v568 = vmul.f32 %v561, %v566
    %570 = vrot.lane.b32.xlu0 %v568, 32
    %v571 = vpop.permute.xlu0 %570
    %v573 = vadd.f32 %v563, %v571
    %v574 = vtanh.pop %v573
    %576 = vrot.lane.b32.xlu0 %v574, 64
    %v577 = vpop.permute.xlu0 %576
    %v579 = vmul.f32 %v561, %v577
    %v580 = vxor.u32 %v554, 2147483648
    %v581 = vmul.f32 %v580, 1.442695
    %v582 = vpow.pop %v581
    %v583 = vadd.f32 %v582, 1.0
    %v584 = vrcp.pop %v583
    %v585 = vmul.f32 1.0, %v584
    %v586 = vtanh.pop %v554
    %v587 = vmul.f32 %v585, %v493
    %589 = vrot.lane.b32.xlu0 %v586, 64
    %v590 = vpop.permute.xlu0 %589
    %v592 = vmul.f32 %v585, %v590
    %594 = vrot.lane.b32.xlu0 %v592, 32
    %v595 = vpop.permute.xlu0 %594
    %v597 = vadd.f32 %v587, %v595
    %v598 = vtanh.pop %v597
    %600 = vrot.lane.b32.xlu0 %v598, 64
    %v601 = vpop.permute.xlu0 %600
    %v603 = vmul.f32 %v585, %v601
    %605 = vrot.lane.b32.xlu0 %v603, 32
    %v606 = vpop.permute.xlu0 %605
    %609 = vrot.lane.b32.xlu0 %v579, 64
    %v610 = vpop.permute.xlu0 %609
    %v612 = vsel %vm78, %v606, %v610
    %v613 = vpack.c.bf16 %v612, %v612
    %v615 = vsel %vm190, %v613, 0
    %617 = vmatprep.subr.bf16.mxu0 0
    %618 = vmatpush1.bf16.msra.mxu0 0
    %619 = vmatprep.subr.bf16.mxu0 0
    %620 = vmatpush1.bf16.msra.mxu0 0
    %621 = vmatprep.subr.bf16.mxu0 0
    %622 = vmatpush1.bf16.msra.mxu0 0
    %623 = vmatprep.subr.bf16.mxu0 0
    %624 = vmatpush1.bf16.msra.mxu0 0
    %625 = vmatprep.subr.bf16.mxu0 %v68
    %626 = vmatpush1.bf16.msra.mxu0 %v67
    %627 = vmatprep.subr.bf16.mxu0 %v66
    %628 = vmatpush1.bf16.msra.mxu0 %v65
    %629 = vmatprep.subr.bf16.mxu0 %v64
    %630 = vmatpush1.bf16.msra.mxu0 %v63
    %631 = vmatprep.subr.bf16.mxu0 %v62
    %632 = vmatpush1.bf16.msra.mxu0 %v61
    %633 = vmatprep.subr.bf16.mxu0 0
    %634 = vmatpush2.bf16.msra.mxu0 0
    %635 = vmatprep.subr.bf16.mxu0 0
    %636 = vmatpush2.bf16.msra.mxu0 0
    %637 = vmatprep.subr.bf16.mxu0 0
    %638 = vmatpush2.bf16.msra.mxu0 0
    %639 = vmatprep.subr.bf16.mxu0 0
    %640 = vmatpush2.bf16.msra.mxu0 0
    %641 = vmatprep.subr.bf16.mxu0 0
    %642 = vmatpush2.bf16.msra.mxu0 0
    %643 = vmatprep.subr.bf16.mxu0 0
    %644 = vmatpush2.bf16.msra.mxu0 0
    %645 = vmatprep.subr.bf16.mxu0 0
    %646 = vmatpush2.bf16.msra.mxu0 0
    %647 = vmatprep.subr.bf16.mxu0 0
    %648 = vmatpush2.bf16.msra.mxu0 0
    %649 = vmatprep.mubr.bf16.mxu0 0
    %650 = vmatmul.mubr.bf16.gmra.mxu0 %v615
    %v651 = vpop.f32.mrf.mxu0
    %v652 = vadd.f32 0.0, %v651
    %v653 = vpop.f32.mrf.mxu0
    %v654 = vadd.f32 0.0, %v653
    %v655 = vpop.f32.mrf.mxu0
    %v656 = vpop.f32.mrf.mxu0
    %657 = vdwg.mxu0
    %v659 = vrot.slane %v157, 2
    %v661 = vadd.f32 %v652, %v659
    %v662 = vadd.f32 %v654, %v70
    %v663 = vxor.u32 %v662, 2147483648
    %v664 = vmul.f32 %v663, 1.442695
    %v665 = vpow.pop %v664
    %v666 = vadd.f32 %v665, 1.0
    %v667 = vrcp.pop %v666
    %v668 = vmul.f32 1.0, %v667
    %v669 = vtanh.pop %v662
    %v670 = vmul.f32 %v668, %v573
    %672 = vrot.lane.b32.xlu0 %v669, 64
    %v673 = vpop.permute.xlu0 %672
    %v675 = vmul.f32 %v668, %v673
    %677 = vrot.lane.b32.xlu0 %v675, 32
    %v678 = vpop.permute.xlu0 %677
    %v680 = vadd.f32 %v670, %v678
    %v681 = vtanh.pop %v680
    %683 = vrot.lane.b32.xlu0 %v681, 64
    %v684 = vpop.permute.xlu0 %683
    %v686 = vmul.f32 %v668, %v684
    %v687 = vxor.u32 %v661, 2147483648
    %v688 = vmul.f32 %v687, 1.442695
    %v689 = vpow.pop %v688
    %v690 = vadd.f32 %v689, 1.0
    %v691 = vrcp.pop %v690
    %v692 = vmul.f32 1.0, %v691
    %v693 = vtanh.pop %v661
    %v694 = vmul.f32 %v692, %v597
    %696 = vrot.lane.b32.xlu0 %v693, 64
    %v697 = vpop.permute.xlu0 %696
    %v699 = vmul.f32 %v692, %v697
    %701 = vrot.lane.b32.xlu0 %v699, 32
    %v702 = vpop.permute.xlu0 %701
    %v704 = vadd.f32 %v694, %v702
    %v705 = vtanh.pop %v704
    %707 = vrot.lane.b32.xlu0 %v705, 64
    %v708 = vpop.permute.xlu0 %707
    %v710 = vmul.f32 %v692, %v708
    %712 = vrot.lane.b32.xlu0 %v710, 32
    %v713 = vpop.permute.xlu0 %712
    %716 = vrot.lane.b32.xlu0 %v686, 64
    %v717 = vpop.permute.xlu0 %716
    %v719 = vsel %vm78, %v713, %v717
    %v720 = vpack.c.bf16 %v719, %v719
    %v722 = vsel %vm190, %v720, 0
    %724 = vmatprep.subr.bf16.mxu0 0
    %725 = vmatpush1.bf16.msra.mxu0 0
    %726 = vmatprep.subr.bf16.mxu0 0
    %727 = vmatpush1.bf16.msra.mxu0 0
    %728 = vmatprep.subr.bf16.mxu0 0
    %729 = vmatpush1.bf16.msra.mxu0 0
    %730 = vmatprep.subr.bf16.mxu0 0
    %731 = vmatpush1.bf16.msra.mxu0 0
    %732 = vmatprep.subr.bf16.mxu0 %v68
    %733 = vmatpush1.bf16.msra.mxu0 %v67
    %734 = vmatprep.subr.bf16.mxu0 %v66
    %735 = vmatpush1.bf16.msra.mxu0 %v65
    %736 = vmatprep.subr.bf16.mxu0 %v64
    %737 = vmatpush1.bf16.msra.mxu0 %v63
    %738 = vmatprep.subr.bf16.mxu0 %v62
    %739 = vmatpush1.bf16.msra.mxu0 %v61
    %740 = vmatprep.subr.bf16.mxu0 0
    %741 = vmatpush2.bf16.msra.mxu0 0
    %742 = vmatprep.subr.bf16.mxu0 0
    %743 = vmatpush2.bf16.msra.mxu0 0
    %744 = vmatprep.subr.bf16.mxu0 0
    %745 = vmatpush2.bf16.msra.mxu0 0
    %746 = vmatprep.subr.bf16.mxu0 0
    %747 = vmatpush2.bf16.msra.mxu0 0
    %748 = vmatprep.subr.bf16.mxu0 0
    %749 = vmatpush2.bf16.msra.mxu0 0
    %750 = vmatprep.subr.bf16.mxu0 0
    %751 = vmatpush2.bf16.msra.mxu0 0
    %752 = vmatprep.subr.bf16.mxu0 0
    %753 = vmatpush2.bf16.msra.mxu0 0
    %754 = vmatprep.subr.bf16.mxu0 0
    %755 = vmatpush2.bf16.msra.mxu0 0
    %756 = vmatprep.mubr.bf16.mxu0 0
    %757 = vmatmul.mubr.bf16.gmra.mxu0 %v722
    %v758 = vpop.f32.mrf.mxu0
    %v759 = vadd.f32 0.0, %v758
    %v760 = vpop.f32.mrf.mxu0
    %v761 = vadd.f32 0.0, %v760
    %v762 = vpop.f32.mrf.mxu0
    %v763 = vpop.f32.mrf.mxu0
    %764 = vdwg.mxu0
    %v765 = vrot.slane %v157, 4
    %v767 = vadd.f32 %v759, %v765
    %v768 = vadd.f32 %v761, %v70
    %v769 = vxor.u32 %v768, 2147483648
    %v770 = vmul.f32 %v769, 1.442695
    %v771 = vpow.pop %v770
    %v772 = vadd.f32 %v771, 1.0
    %v773 = vrcp.pop %v772
    %v774 = vmul.f32 1.0, %v773
    %v775 = vtanh.pop %v768
    %v776 = vmul.f32 %v774, %v680
    %778 = vrot.lane.b32.xlu0 %v775, 64
    %v779 = vpop.permute.xlu0 %778
    %v781 = vmul.f32 %v774, %v779
    %783 = vrot.lane.b32.xlu0 %v781, 32
    %v784 = vpop.permute.xlu0 %783
    %v786 = vadd.f32 %v776, %v784
    %v787 = vtanh.pop %v786
    %789 = vrot.lane.b32.xlu0 %v787, 64
    %v790 = vpop.permute.xlu0 %789
    %v792 = vmul.f32 %v774, %v790
    %v793 = vxor.u32 %v767, 2147483648
    %v794 = vmul.f32 %v793, 1.442695
    %v795 = vpow.pop %v794
    %v796 = vadd.f32 %v795, 1.0
    %v797 = vrcp.pop %v796
    %v798 = vmul.f32 1.0, %v797
    %v799 = vtanh.pop %v767
    %v800 = vmul.f32 %v798, %v704
    %802 = vrot.lane.b32.xlu0 %v799, 64
    %v803 = vpop.permute.xlu0 %802
    %v805 = vmul.f32 %v798, %v803
    %807 = vrot.lane.b32.xlu0 %v805, 32
    %v808 = vpop.permute.xlu0 %807
    %v810 = vadd.f32 %v800, %v808
    %v811 = vtanh.pop %v810
    %813 = vrot.lane.b32.xlu0 %v811, 64
    %v814 = vpop.permute.xlu0 %813
    %v816 = vmul.f32 %v798, %v814
    %818 = vrot.lane.b32.xlu0 %v816, 32
    %v819 = vpop.permute.xlu0 %818
    %822 = vrot.lane.b32.xlu0 %v792, 64
    %v823 = vpop.permute.xlu0 %822
    %v825 = vsel %vm78, %v819, %v823
    %v826 = vpack.c.bf16 %v825, %v825
    %v828 = vsel %vm190, %v826, 0
    %830 = vmatprep.subr.bf16.mxu0 0
    %831 = vmatpush1.bf16.msra.mxu0 0
    %832 = vmatprep.subr.bf16.mxu0 0
    %833 = vmatpush1.bf16.msra.mxu0 0
    %834 = vmatprep.subr.bf16.mxu0 0
    %835 = vmatpush1.bf16.msra.mxu0 0
    %836 = vmatprep.subr.bf16.mxu0 0
    %837 = vmatpush1.bf16.msra.mxu0 0
    %838 = vmatprep.subr.bf16.mxu0 %v68
    %839 = vmatpush1.bf16.msra.mxu0 %v67
    %840 = vmatprep.subr.bf16.mxu0 %v66
    %841 = vmatpush1.bf16.msra.mxu0 %v65
    %842 = vmatprep.subr.bf16.mxu0 %v64
    %843 = vmatpush1.bf16.msra.mxu0 %v63
    %844 = vmatprep.subr.bf16.mxu0 %v62
    %845 = vmatpush1.bf16.msra.mxu0 %v61
    %846 = vmatprep.subr.bf16.mxu0 0
    %847 = vmatpush2.bf16.msra.mxu0 0
    %848 = vmatprep.subr.bf16.mxu0 0
    %849 = vmatpush2.bf16.msra.mxu0 0
    %850 = vmatprep.subr.bf16.mxu0 0
    %851 = vmatpush2.bf16.msra.mxu0 0
    %852 = vmatprep.subr.bf16.mxu0 0
    %853 = vmatpush2.bf16.msra.mxu0 0
    %854 = vmatprep.subr.bf16.mxu0 0
    %855 = vmatpush2.bf16.msra.mxu0 0
    %856 = vmatprep.subr.bf16.mxu0 0
    %857 = vmatpush2.bf16.msra.mxu0 0
    %858 = vmatprep.subr.bf16.mxu0 0
    %859 = vmatpush2.bf16.msra.mxu0 0
    %860 = vmatprep.subr.bf16.mxu0 0
    %861 = vmatpush2.bf16.msra.mxu0 0
    %862 = vmatprep.mubr.bf16.mxu0 0
    %863 = vmatmul.mubr.bf16.gmra.mxu0 %v828
    %v864 = vpop.f32.mrf.mxu0
    %v865 = vadd.f32 0.0, %v864
    %v866 = vpop.f32.mrf.mxu0
    %v867 = vadd.f32 0.0, %v866
    %v868 = vpop.f32.mrf.mxu0
    %v869 = vpop.f32.mrf.mxu0
    %870 = vdwg.mxu0
    %v871 = vrot.slane %v157, 6
    %v873 = vadd.f32 %v865, %v871
    %v874 = vadd.f32 %v867, %v70
    %v875 = vxor.u32 %v874, 2147483648
    %v876 = vmul.f32 %v875, 1.442695
    %v877 = vpow.pop %v876
    %v878 = vadd.f32 %v877, 1.0
    %v879 = vrcp.pop %v878
    %v880 = vmul.f32 1.0, %v879
    %v881 = vtanh.pop %v874
    %v882 = vmul.f32 %v880, %v786
    %884 = vrot.lane.b32.xlu0 %v881, 64
    %v885 = vpop.permute.xlu0 %884
    %v887 = vmul.f32 %v880, %v885
    %889 = vrot.lane.b32.xlu0 %v887, 32
    %v890 = vpop.permute.xlu0 %889
    %v892 = vadd.f32 %v882, %v890
    %v893 = vtanh.pop %v892
    %895 = vrot.lane.b32.xlu0 %v893, 64
    %v896 = vpop.permute.xlu0 %895
    %v898 = vmul.f32 %v880, %v896
    %v899 = vxor.u32 %v873, 2147483648
    %v900 = vmul.f32 %v899, 1.442695
    %v901 = vpow.pop %v900
    %v902 = vadd.f32 %v901, 1.0
    %v903 = vrcp.pop %v902
    %v904 = vmul.f32 1.0, %v903
    %v905 = vtanh.pop %v873
    %v906 = vmul.f32 %v904, %v810
    %908 = vrot.lane.b32.xlu0 %v905, 64
    %v909 = vpop.permute.xlu0 %908
    %v911 = vmul.f32 %v904, %v909
    %913 = vrot.lane.b32.xlu0 %v911, 32
    %v914 = vpop.permute.xlu0 %913
    %v916 = vadd.f32 %v906, %v914
    %v917 = vtanh.pop %v916
    %919 = vrot.lane.b32.xlu0 %v917, 64
    %v920 = vpop.permute.xlu0 %919
    %v922 = vmul.f32 %v904, %v920
    %924 = vrot.lane.b32.xlu0 %v922, 32
    %v925 = vpop.permute.xlu0 %924
    %928 = vrot.lane.b32.xlu0 %v898, 64
    %v929 = vpop.permute.xlu0 %928
    %v931 = vsel %vm78, %v925, %v929
    %v932 = vpack.c.bf16 %v931, %v931
    %v934 = vsel %vm190, %v932, 0
    %936 = vmatprep.subr.bf16.mxu0 0
    %937 = vmatpush1.bf16.msra.mxu0 0
    %938 = vmatprep.subr.bf16.mxu0 0
    %939 = vmatpush1.bf16.msra.mxu0 0
    %940 = vmatprep.subr.bf16.mxu0 0
    %941 = vmatpush1.bf16.msra.mxu0 0
    %942 = vmatprep.subr.bf16.mxu0 0
    %943 = vmatpush1.bf16.msra.mxu0 0
    %944 = vmatprep.subr.bf16.mxu0 %v68
    %945 = vmatpush1.bf16.msra.mxu0 %v67
    %946 = vmatprep.subr.bf16.mxu0 %v66
    %947 = vmatpush1.bf16.msra.mxu0 %v65
    %948 = vmatprep.subr.bf16.mxu0 %v64
    %949 = vmatpush1.bf16.msra.mxu0 %v63
    %950 = vmatprep.subr.bf16.mxu0 %v62
    %951 = vmatpush1.bf16.msra.mxu0 %v61
    %952 = vmatprep.subr.bf16.mxu0 0
    %953 = vmatpush2.bf16.msra.mxu0 0
    %954 = vmatprep.subr.bf16.mxu0 0
    %955 = vmatpush2.bf16.msra.mxu0 0
    %956 = vmatprep.subr.bf16.mxu0 0
    %957 = vmatpush2.bf16.msra.mxu0 0
    %958 = vmatprep.subr.bf16.mxu0 0
    %959 = vmatpush2.bf16.msra.mxu0 0
    %960 = vmatprep.subr.bf16.mxu0 0
    %961 = vmatpush2.bf16.msra.mxu0 0
    %962 = vmatprep.subr.bf16.mxu0 0
    %963 = vmatpush2.bf16.msra.mxu0 0
    %964 = vmatprep.subr.bf16.mxu0 0
    %965 = vmatpush2.bf16.msra.mxu0 0
    %966 = vmatprep.subr.bf16.mxu0 0
    %967 = vmatpush2.bf16.msra.mxu0 0
    %968 = vmatprep.mubr.bf16.mxu0 0
    %969 = vmatmul.mubr.bf16.gmra.mxu0 %v934
    %v970 = vpop.f32.mrf.mxu0
    %v971 = vpop.f32.mrf.mxu0
    %v972 = vadd.f32 0.0, %v971
    %v973 = vpop.f32.mrf.mxu0
    %v974 = vpop.f32.mrf.mxu0
    %975 = vdwg.mxu0
    %v976 = vadd.f32 %v972, %v70
    %v977 = vxor.u32 %v976, 2147483648
    %v978 = vmul.f32 %v977, 1.442695
    %v979 = vpow.pop %v978
    %v980 = vadd.f32 %v979, 1.0
    %v981 = vrcp.pop %v980
    %v982 = vmul.f32 1.0, %v981
    %v983 = vtanh.pop %v976
    %v984 = vmul.f32 %v982, %v892
    %986 = vrot.lane.b32.xlu0 %v983, 64
    %v987 = vpop.permute.xlu0 %986
    %v989 = vmul.f32 %v982, %v987
    %991 = vrot.lane.b32.xlu0 %v989, 32
    %v992 = vpop.permute.xlu0 %991
    %v994 = vadd.f32 %v984, %v992
    %v995 = vtanh.pop %v994
    %997 = vrot.lane.b32.xlu0 %v995, 64
    %v998 = vpop.permute.xlu0 %997
    %v1000 = vmul.f32 %v982, %v998
    %v1001 = vrot.slane %v369, 6
    %v1003 = vrot.slane %v475, 4
    %v1005 = vrot.slane %v579, 2
    %v1007 = vrot.slane %v792, 6
    %v1009 = vrot.slane %v898, 4
    %v1012 = vrot.slane %v1000, 2
    %vm1014 = vcmask 1041408
    %v1015 = vsel %vm1014, %v263, %v1001
    %vm1016 = vcmask 1043456
    %v1017 = vsel %vm1016, %v1015, %v1003
    %vm1018 = vcmask 1045504
    %v1019 = vsel %vm1018, %v1017, %v1005
    %v1020 = vsel %vm1014, %v686, %v1007
    %v1021 = vsel %vm1016, %v1020, %v1009
    %v1022 = vsel %vm1018, %v1021, %v1012
    %1025 = vrot.lane.b32.xlu0 %v1019, 32
    %v1026 = vpop.permute.xlu0 %1025
    %1027 = vrot.lane.b32.xlu0 %v1022, 32
    %v1028 = vpop.permute.xlu0 %1027
    %v1029 = vsel %vm78, %v1026, 0
    %v1031 = vsel %vm78, %v1028, 0
    %1033 = vmatprep.subr.mxu0 0.0
    %1034 = vmatpush1.msra.mxu0 0.0
    %1035 = vmatprep.subr.mxu0 0.0
    %1036 = vmatpush1.msra.mxu0 0.0
    %1037 = vmatprep.subr.mxu0 0.0
    %1038 = vmatpush1.msra.mxu0 0.0
    %1039 = vmatprep.subr.mxu0 0.0
    %1040 = vmatpush1.msra.mxu0 0.0
    %1041 = vmatprep.subr.mxu0 0.0
    %1042 = vmatpush1.msra.mxu0 0.0
    %1043 = vmatprep.subr.mxu0 0.0
    %1044 = vmatpush1.msra.mxu0 0.0
    %1045 = vmatprep.subr.mxu0 0.0
    %1046 = vmatpush1.msra.mxu0 0.0
    %1047 = vmatprep.subr.mxu0 0.0
    %1048 = vmatpush1.msra.mxu0 0.0
    %1049 = vmatprep.subr.mxu0 0.0
    %1050 = vmatpush1.msra.mxu0 0.0
    %1051 = vmatprep.subr.mxu0 0.0
    %1052 = vmatpush1.msra.mxu0 0.0
    %1053 = vmatprep.subr.mxu0 0.0
    %1054 = vmatpush1.msra.mxu0 0.0
    %1055 = vmatprep.subr.mxu0 0.0
    %1056 = vmatpush1.msra.mxu0 0.0
    %1057 = vmatprep.subr.mxu0 0.0
    %1058 = vmatpush1.msra.mxu0 %v74
    %1059 = vmatprep.subr.mxu0 0.0
    %1060 = vmatpush1.msra.mxu0 %v73
    %1061 = vmatprep.subr.mxu0 0.0
    %1062 = vmatpush1.msra.mxu0 %v72
    %1063 = vmatprep.subr.mxu0 0.0
    %1064 = vmatpush1.msra.mxu0 %v71
    %1065 = vmatprep.subr.mxu0 0.0
    %1066 = vmatpush2.msra.mxu0 0.0
    %1067 = vmatprep.subr.mxu0 0.0
    %1068 = vmatpush2.msra.mxu0 0.0
    %1069 = vmatprep.subr.mxu0 0.0
    %1070 = vmatpush2.msra.mxu0 0.0
    %1071 = vmatprep.subr.mxu0 0.0
    %1072 = vmatpush2.msra.mxu0 0.0
    %1073 = vmatprep.subr.mxu0 0.0
    %1074 = vmatpush2.msra.mxu0 0.0
    %1075 = vmatprep.subr.mxu0 0.0
    %1076 = vmatpush2.msra.mxu0 0.0
    %1077 = vmatprep.subr.mxu0 0.0
    %1078 = vmatpush2.msra.mxu0 0.0
    %1079 = vmatprep.subr.mxu0 0.0
    %1080 = vmatpush2.msra.mxu0 0.0
    %1081 = vmatprep.subr.mxu0 0.0
    %1082 = vmatpush2.msra.mxu0 0.0
    %1083 = vmatprep.subr.mxu0 0.0
    %1084 = vmatpush2.msra.mxu0 0.0
    %1085 = vmatprep.subr.mxu0 0.0
    %1086 = vmatpush2.msra.mxu0 0.0
    %1087 = vmatprep.subr.mxu0 0.0
    %1088 = vmatpush2.msra.mxu0 0.0
    %1089 = vmatprep.subr.mxu0 0.0
    %1090 = vmatpush2.msra.mxu0 0.0
    %1091 = vmatprep.subr.mxu0 0.0
    %1092 = vmatpush2.msra.mxu0 0.0
    %1093 = vmatprep.subr.mxu0 0.0
    %1094 = vmatpush2.msra.mxu0 0.0
    %1095 = vmatprep.subr.mxu0 0.0
    %1096 = vmatpush2.msra.mxu0 0.0
    %1097 = vmatprep.mubr.f32.mxu0 0.0
    %1098 = vmatmul.mubr.f32.gmra.mxu0 %v1029
    %v1099 = vpop.f32.mrf.mxu0
    %v1100 = vadd.f32 %v75, %v1099
    %v1101 = vpop.f32.mrf.mxu0
    %1102 = vmatprep.mubr.f32.mxu0 0.0
    %1103 = vmatmul.mubr.f32.gmra.mxu0 %v1031
    %v1104 = vpop.f32.mrf.mxu0
    %v1105 = vadd.f32 %v75, %v1104
    %v1106 = vpop.f32.mrf.mxu0
    %1107 = vdwg.mxu0
    %1108 = vmax.xlane.f32.xlu0 %v1100
    %v1109 = vpop.xlane.xlu0 %1108
    %1110 = vmax.xlane.f32.xlu0 %v1105
    %v1111 = vpop.xlane.xlu0 %1110
    %v1112 = vsub.f32 %v1100, %v1109
    %v1113 = vsub.f32 %v1105, %v1111
    %v1114 = vmul.f32 %v1112, 1.442695
    %v1115 = vpow.pop %v1114
    %v1116 = vmul.f32 %v1113, 1.442695
    %v1117 = vpow.pop %v1116
    %1118 = vadd.xlane.f32.xlu0 %v1115
    %v1119 = vpop.xlane.xlu0 %1118
    %1120 = vadd.xlane.f32.xlu0 %v1117
    %v1121 = vpop.xlane.xlu0 %1120
    %v1122 = vlog2.pop %v1119
    %v1123 = vmul.f32 %v1122, 0.6931472
    %v1124 = vlog2.pop %v1121
    %v1125 = vmul.f32 %v1124, 0.6931472
    %v1126 = vadd.f32 %v1123, %v1109
    %v1127 = vadd.f32 %v1125, %v1111
    %v1128 = vsub.f32 %v1100, %v1126
    %v1129 = vsub.f32 %v1105, %v1127
    %1130 = vst [vmem:[#allocation7] sm:$0xff] %v1128
    %1131 = vst [vmem:[#allocation7 + $0x8] sm:$0xff] %v1129
    // Predicated region
    $region18: #{tpu_custom_call.1} parent=1 // pred_check
      _
    $region19: #{tpu_custom_call.1} parent=1 // pred_check_branch
      %1133 = sbr.rel (0) target = $region21
    $region20: #{tpu_custom_call.1} parent=1 // pred_region
      %s1135 = ssub.s32 256, 256
      %1136 = vsyncadd [#allocation4], %s1135
      %s1137 = sshll.u32 [#allocation7], 4
      %s1138 = int_to_ptr.vmem [resolvable:$true] %s1137
      %1143 = dma.vmem_to_hbm [thread:$0]  %s1138, 256, %s2, [#allocation4], 128, 128, 8
    $region21: #{tpu_custom_call.1} parent=1 // pred_fallthru
      _
    // Predicated region
    $region22: #{tpu_custom_call.1} parent=1 // pred_check
      _
    $region23: #{tpu_custom_call.1} parent=1 // pred_check_branch
      %1145 = sbr.rel (0) target = $region25
    $region24: #{tpu_custom_call.1} parent=1 // pred_region
      %1146 = dma.done [#allocation4], 256
    $region25: #{tpu_custom_call.1} parent=1 // pred_fallthru
      _
    %1147 = vsyncpa [#allocation3], 1
    %1148 = vsyncpa [#allocation6], 1
    %1149 = vsyncpa [#allocation4], 1

</llo_original>
